<compile_context>
chip_gen: v5e
topology: v5e:2x2
jax: 0.10.0
libtpu: 0.0.40
codegen_flags: <defaults>
</compile_context>

<pallas_src>
import numpy as np
import jax
import jax.numpy as jnp
from jax.experimental import pallas as pl
from jax.experimental.pallas import tpu as pltpu

# ---- small deterministic stand-in for load_config()['audio'] -----------------
SAMPLE_RATE = 1024
CHUNK_LEN   = 1
NUM_SAMPLES = SAMPLE_RATE * CHUNK_LEN          # 1024
N_FFT       = 256
HOP_LEN     = 64
N_MELS      = 32
N_FREQ      = N_FFT // 2 + 1                   # 129 one-sided bins
N_FREQ_K    = 128                              # bins kept (Nyquist dropped: ~0 mel weight)
N_FRAMES    = NUM_SAMPLES // HOP_LEN           # 16  (spec[..., :-1] drops last frame)
N_MELS_PAD  = 128                              # lane-dense output pad
PAD_SAMPLES = NUM_SAMPLES + N_FFT              # 1280 reflect-padded samples (10*128 lanes)
MAX_B_BLK   = 64                               # examples per grid step cap (M = 1024 rows)
MIN_GRID    = 4                                # >= 2 steps per TC on v7x dual-core


def _pick_b_blk(batch):
    """Largest block (multiple of 8, <= MAX_B_BLK) that still yields >= MIN_GRID steps."""
    per_step = -(-batch // MIN_GRID)               # ceil(batch / MIN_GRID)
    per_step = -(-per_step // 8) * 8               # round up to a sublane multiple
    return int(max(8, min(MAX_B_BLK, per_step)))


# ------------------------------ Pallas kernel ---------------------------------
def _log_mel_kernel(wav_ref, cs_ref, fb_ref, out_ref):
    # wav_ref: (B_BLK, PAD_SAMPLES)      bf16  reflect-padded waveform
    # cs_ref : (N_FFT, 2*N_FREQ_K)       bf16  hann-weighted [cos | sin] DFT basis
    # fb_ref : (N_FREQ_K, N_MELS_PAD)    f32   mel filterbank (cols >= N_MELS are zero)
    # out_ref: (N_FRAMES*B_BLK, N_MELS_PAD) bf16  frame-major rows (row = t*B_BLK + b)
    wav = wav_ref[...]
    nb = wav.shape[0]

    # Fused framing: hop/n_fft are compile-time constants -> 16 static lane
    # slices, concatenated along sublanes in frame-major order (row = t*nb + b).
    x = jnp.concatenate(
        [wav[:, t * HOP_LEN : t * HOP_LEN + N_FFT] for t in range(N_FRAMES)],
        axis=0,
    )                                                           # (16*nb, 256) bf16

    # One MXU pass for real+imag DFT (shared LHS), f32 accumulation.
    ri = jnp.dot(x, cs_ref[...], preferred_element_type=jnp.float32)   # (rows, 256)
    real = ri[:, :N_FREQ_K]                                      # vreg-aligned split
    imag = ri[:, N_FREQ_K:]
    power = real * real + imag * imag                            # (rows, 128) f32

    # Mel matmul in f32 (tiny K=N=128): no bf16 cast of `power` (VALU filler on
    # v5e) and no quiet-bin precision loss before the log10.
    mel = jnp.dot(power, fb_ref[...], preferred_element_type=jnp.float32)  # (rows, 128)

    # norm_mel -- per-example max over (frames, mels).  Padded mel lanes are
    # exact zeros -> log10(1e-10) = -10, real lanes are clamped to >= -10, so
    # padding never raises the max (clamp constant tied to zero fb padding).
    log_spec = jnp.log10(jnp.maximum(mel, 1e-10))
    ls3 = log_spec.reshape(N_FRAMES, nb, N_MELS_PAD)
    mx = jnp.max(jnp.max(ls3, axis=2, keepdims=True), axis=0, keepdims=True)  # (1, nb, 1)
    out3 = (jnp.maximum(ls3, mx - 8.0) + 4.0) * 0.25
    out_ref[...] = out3.reshape(N_FRAMES * nb, N_MELS_PAD).astype(out_ref.dtype)


def log_mel_pallas(wav, cs, fb):
    B = wav.shape[0]
    b_blk = _pick_b_blk(B)
    n_blk = -(-B // b_blk)
    b_pad = n_blk * b_blk
    if b_pad != B:
        wav = jnp.pad(wav, ((0, b_pad - B), (0, 0)))

    # torchaudio Spectrogram defaults: center=True, pad_mode='reflect'.
    padded = jnp.pad(wav, ((0, 0), (N_FFT // 2, N_FFT // 2)), mode="reflect")
    padded = padded.astype(jnp.bfloat16)                        # (b_pad, 1280)

    rows_blk = N_FRAMES * b_blk
    rows_tot = N_FRAMES * b_pad
    cost = pl.CostEstimate(
        flops=(2 * rows_tot * N_FFT * (2 * N_FREQ_K)             # DFT matmul
               + 3 * rows_tot * N_FREQ_K                          # power spectrum
               + 2 * rows_tot * N_FREQ_K * N_MELS_PAD             # mel matmul
               + 4 * rows_tot * N_MELS_PAD),                      # norm_mel
        transcendentals=rows_tot * N_MELS_PAD,                    # log10
        bytes_accessed=(b_pad * PAD_SAMPLES * 2                   # wav in (bf16)
                        + N_FFT * 2 * N_FREQ_K * 2                # cs (bf16)
                        + N_FREQ_K * N_MELS_PAD * 4               # fb (f32)
                        + rows_tot * N_MELS_PAD * 2),             # out (bf16)
    )

    out2d = pl.pallas_call(
        _log_mel_kernel,
        out_shape=jax.ShapeDtypeStruct((rows_tot, N_MELS_PAD), jnp.bfloat16),
        grid=(n_blk,),
        in_specs=[
            pl.BlockSpec((b_blk, PAD_SAMPLES), lambda i: (i, 0)),
            pl.BlockSpec((N_FFT, 2 * N_FREQ_K), lambda i: (0, 0)),   # constant, VMEM-resident
            pl.BlockSpec((N_FREQ_K, N_MELS_PAD), lambda i: (0, 0)),  # constant, VMEM-resident
        ],
        out_specs=pl.BlockSpec((rows_blk, N_MELS_PAD), lambda i: (i, 0)),
        compiler_params=pltpu.CompilerParams(
            dimension_semantics=("parallel",),
            vmem_limit_bytes=32 * 1024 * 1024,
        ),
        cost_estimate=cost,
    )(padded, cs.astype(jnp.bfloat16), fb.astype(jnp.float32))

    # Frame-major kernel rows -> (B, n_mels, n_frames), dropping padded lanes/examples.
    out = out2d.reshape(n_blk, N_FRAMES, b_blk, N_MELS_PAD)[:, :, :, :N_MELS]
    out = jnp.transpose(out, (0, 2, 3, 1)).reshape(b_pad, N_MELS, N_FRAMES)
    return out[:B].astype(jnp.float32)


# --------------------- deterministic parameter construction -------------------
def _hann(n):
    # torch.hann_window(n, periodic=True)
    return 0.5 * (1.0 - np.cos(2.0 * np.pi * np.arange(n) / n))


def _mel_fbanks_full():
    # torchaudio.functional.melscale_fbanks, htk scale, norm=None, f_min=0, f_max=sr/2
    all_freqs = np.linspace(0.0, SAMPLE_RATE / 2, N_FREQ)
    hz2mel = lambda f: 2595.0 * np.log10(1.0 + f / 700.0)
    mel2hz = lambda m: 700.0 * (10.0 ** (m / 2595.0) - 1.0)
    m_pts = np.linspace(hz2mel(0.0), hz2mel(SAMPLE_RATE / 2), N_MELS + 2)
    f_pts = mel2hz(m_pts)
    f_diff = f_pts[1:] - f_pts[:-1]
    slopes = f_pts[None, :] - all_freqs[:, None]
    down = -slopes[:, :-2] / f_diff[:-1]
    up = slopes[:, 2:] / f_diff[1:]
    return np.maximum(0.0, np.minimum(down, up)).astype(np.float32)   # (N_FREQ, N_MELS)


def _build_constants():
    fb_full = _mel_fbanks_full()                                  # (129, 32)
    # The dropped Nyquist bin must carry (numerically) zero mel weight; with
    # f_max = sr/2 and norm=None its triangle edge is 0 up to float roundoff.
    assert float(np.abs(fb_full[N_FREQ - 1, :]).max()) < 1e-6, \
        "Nyquist mel weight not negligible; cannot drop the bin"
    fb_pad = np.zeros((N_FREQ_K, N_MELS_PAD), np.float32)
    fb_pad[:, :N_MELS] = fb_full[:N_FREQ_K, :]

    win = _hann(N_FFT).astype(np.float64)
    n = np.arange(N_FFT)[:, None]
    k = np.arange(N_FREQ_K)[None, :]                              # Nyquist dropped
    ang = 2.0 * np.pi * n * k / N_FFT
    # fold the hann window into the combined DFT matrix: [cos | sin] * win
    cs = (np.concatenate([np.cos(ang), np.sin(ang)], axis=1) * win[:, None]).astype(np.float32)
    return cs, fb_pad                                             # (256, 256), (128, 128)


# ------------------------------ pure-JAX reference ----------------------------
def ref_log_mel(wav, cs, fb, compute_dtype=jnp.float32):
    padded = jnp.pad(wav, ((0, 0), (N_FFT // 2, N_FFT // 2)), mode="reflect")
    idx = jnp.arange(N_FRAMES)[:, None] * HOP_LEN + jnp.arange(N_FFT)[None, :]
    frames = padded[:, idx].astype(compute_dtype)                    # (B, T, 256)
    ri = jnp.einsum("btn,nf->btf", frames, cs.astype(compute_dtype),
                    preferred_element_type=jnp.float32)
    real = ri[..., :N_FREQ_K]
    imag = ri[..., N_FREQ_K:]
    power = real * real + imag * imag                                # f32
    mel = jnp.einsum("btf,fm->btm", power, fb.astype(jnp.float32),
                     preferred_element_type=jnp.float32)[..., :N_MELS]
    log_spec = jnp.log10(jnp.maximum(mel, 1e-10))
    mx = jnp.max(log_spec, axis=(1, 2), keepdims=True)
    log_spec = jnp.maximum(log_spec, mx - 8.0)
    return jnp.transpose((log_spec + 4.0) / 4.0, (0, 2, 1))


if __name__ == "__main__":
    key = jax.random.PRNGKey(0)
    B = 64                                 # -> b_blk=16, grid=4 (>= 2 steps per TC on v7x)
    wav = 0.1 * jax.random.normal(key, (B, NUM_SAMPLES), dtype=jnp.float32)

    cs_np, fb_np = _build_constants()
    cs = jnp.asarray(cs_np)
    fb = jnp.asarray(fb_np)

    out = jax.block_until_ready(log_mel_pallas(wav, cs, fb))
    assert out.shape == (B, N_MELS, N_FRAMES), out.shape
    assert out.dtype == jnp.float32

    # matched-precision reference (same bf16 DFT inputs / f32 accumulate as the kernel)
    ref_bf = jax.block_until_ready(ref_log_mel(wav, cs, fb, jnp.bfloat16))
    # full-f32 reference (faithful to the PyTorch module's float math)
    ref_f32 = jax.block_until_ready(ref_log_mel(wav, cs, fb, jnp.float32))

    assert bool(jnp.allclose(out, ref_bf, atol=2e-2, rtol=2e-2)), "mismatch vs matched-precision reference"
    assert bool(jnp.allclose(out, ref_f32, atol=6e-2, rtol=6e-2)), "mismatch vs f32 reference"
    print("KERNEL_OK")
</pallas_src>

<mosaic_0001>
module attributes {stable_mosaic.version = 11 : i64} {
  func.func @_log_mel_kernel(%arg0: i32, %arg1: memref<16x1280xbf16, #tpu.memory_space<vmem>>, %arg2: memref<256x256xbf16, #tpu.memory_space<vmem>>, %arg3: memref<128x128xf32, #tpu.memory_space<vmem>>, %arg4: memref<256x128xbf16, #tpu.memory_space<vmem>>) attributes {dimension_semantics = [#tpu.dimension_semantics<parallel>], iteration_bounds = array<i64: 4>, scalar_prefetch = 0 : i64, scratch_operands = 0 : i64, tpu.core_type = #tpu.core_type<tc>, window_params = [{transform_indices = @transform_0, window_bounds = array<i64: 16, 1280>}, {pipeline_mode = #tpu.pipeline_mode<synchronous>, transform_indices = @transform_1, window_bounds = array<i64: 256, 256>}, {pipeline_mode = #tpu.pipeline_mode<synchronous>, transform_indices = @transform_2, window_bounds = array<i64: 128, 128>}, {transform_indices = @transform_3, window_bounds = array<i64: 256, 128>}]} {
    %c0 = arith.constant 0 : index
    %c0_0 = arith.constant 0 : index
    %0 = vector.load %arg1[%c0, %c0_0] : memref<16x1280xbf16, #tpu.memory_space<vmem>>, vector<16x1280xbf16>
    %1 = vector.extract_strided_slice %0 {offsets = [0, 0], sizes = [16, 256], strides = [1, 1]} : vector<16x1280xbf16> to vector<16x256xbf16>
    %2 = vector.extract_strided_slice %0 {offsets = [0, 64], sizes = [16, 256], strides = [1, 1]} : vector<16x1280xbf16> to vector<16x256xbf16>
    %3 = vector.extract_strided_slice %0 {offsets = [0, 128], sizes = [16, 256], strides = [1, 1]} : vector<16x1280xbf16> to vector<16x256xbf16>
    %4 = vector.extract_strided_slice %0 {offsets = [0, 192], sizes = [16, 256], strides = [1, 1]} : vector<16x1280xbf16> to vector<16x256xbf16>
    %5 = vector.extract_strided_slice %0 {offsets = [0, 256], sizes = [16, 256], strides = [1, 1]} : vector<16x1280xbf16> to vector<16x256xbf16>
    %6 = vector.extract_strided_slice %0 {offsets = [0, 320], sizes = [16, 256], strides = [1, 1]} : vector<16x1280xbf16> to vector<16x256xbf16>
    %7 = vector.extract_strided_slice %0 {offsets = [0, 384], sizes = [16, 256], strides = [1, 1]} : vector<16x1280xbf16> to vector<16x256xbf16>
    %8 = vector.extract_strided_slice %0 {offsets = [0, 448], sizes = [16, 256], strides = [1, 1]} : vector<16x1280xbf16> to vector<16x256xbf16>
    %9 = vector.extract_strided_slice %0 {offsets = [0, 512], sizes = [16, 256], strides = [1, 1]} : vector<16x1280xbf16> to vector<16x256xbf16>
    %10 = vector.extract_strided_slice %0 {offsets = [0, 576], sizes = [16, 256], strides = [1, 1]} : vector<16x1280xbf16> to vector<16x256xbf16>
    %11 = vector.extract_strided_slice %0 {offsets = [0, 640], sizes = [16, 256], strides = [1, 1]} : vector<16x1280xbf16> to vector<16x256xbf16>
    %12 = vector.extract_strided_slice %0 {offsets = [0, 704], sizes = [16, 256], strides = [1, 1]} : vector<16x1280xbf16> to vector<16x256xbf16>
    %13 = vector.extract_strided_slice %0 {offsets = [0, 768], sizes = [16, 256], strides = [1, 1]} : vector<16x1280xbf16> to vector<16x256xbf16>
    %14 = vector.extract_strided_slice %0 {offsets = [0, 832], sizes = [16, 256], strides = [1, 1]} : vector<16x1280xbf16> to vector<16x256xbf16>
    %15 = vector.extract_strided_slice %0 {offsets = [0, 896], sizes = [16, 256], strides = [1, 1]} : vector<16x1280xbf16> to vector<16x256xbf16>
    %16 = vector.extract_strided_slice %0 {offsets = [0, 960], sizes = [16, 256], strides = [1, 1]} : vector<16x1280xbf16> to vector<16x256xbf16>
    %17 = tpu.concatenate %1, %2, %3, %4, %5, %6, %7, %8, %9, %10, %11, %12, %13, %14, %15, %16 in 0 : vector<16x256xbf16>, vector<16x256xbf16>, vector<16x256xbf16>, vector<16x256xbf16>, vector<16x256xbf16>, vector<16x256xbf16>, vector<16x256xbf16>, vector<16x256xbf16>, vector<16x256xbf16>, vector<16x256xbf16>, vector<16x256xbf16>, vector<16x256xbf16>, vector<16x256xbf16>, vector<16x256xbf16>, vector<16x256xbf16>, vector<16x256xbf16> -> vector<256x256xbf16>
    %c0_1 = arith.constant 0 : index
    %c0_2 = arith.constant 0 : index
    %18 = vector.load %arg2[%c0_1, %c0_2] : memref<256x256xbf16, #tpu.memory_space<vmem>>, vector<256x256xbf16>
    %cst = arith.constant dense<0.000000e+00> : vector<256x256xf32>
    %19 = tpu.matmul %17, %18, %cst {dimension_numbers = #tpu.dot_dimension_numbers<[1], [0], [0], [1], [0, 0, 1, 1], [], []>} : vector<256x256xbf16>, vector<256x256xbf16>, vector<256x256xf32> -> vector<256x256xf32>
    %20 = vector.extract_strided_slice %19 {offsets = [0, 0], sizes = [256, 128], strides = [1, 1]} : vector<256x256xf32> to vector<256x128xf32>
    %21 = vector.extract_strided_slice %19 {offsets = [0, 128], sizes = [256, 128], strides = [1, 1]} : vector<256x256xf32> to vector<256x128xf32>
    %22 = arith.mulf %20, %20 : vector<256x128xf32>
    %23 = arith.mulf %21, %21 : vector<256x128xf32>
    %24 = arith.addf %22, %23 : vector<256x128xf32>
    %c0_3 = arith.constant 0 : index
    %c0_4 = arith.constant 0 : index
    %25 = vector.load %arg3[%c0_3, %c0_4] : memref<128x128xf32, #tpu.memory_space<vmem>>, vector<128x128xf32>
    %cst_5 = arith.constant dense<0.000000e+00> : vector<256x128xf32>
    %26 = tpu.matmul %24, %25, %cst_5 {dimension_numbers = #tpu.dot_dimension_numbers<[1], [0], [0], [1], [0, 0, 1, 1], [], []>} : vector<256x128xf32>, vector<128x128xf32>, vector<256x128xf32> -> vector<256x128xf32>
    %cst_6 = arith.constant 1.000000e-10 : f32
    %27 = vector.broadcast %cst_6 : f32 to vector<256x128xf32>
    %28 = arith.maximumf %26, %27 : vector<256x128xf32>
    %29 = math.log %28 : vector<256x128xf32>
    %cst_7 = arith.constant 0.434294492 : f32
    %30 = vector.broadcast %cst_7 : f32 to vector<256x128xf32>
    %31 = arith.mulf %29, %30 : vector<256x128xf32>
    %32 = vector.shape_cast %31 : vector<256x128xf32> to vector<16x16x128xf32>
    %cst_8 = arith.constant dense<0xFF800000> : vector<16x16xf32>
    %33 = vector.multi_reduction <maximumf>, %32, %cst_8 [2] : vector<16x16x128xf32> to vector<16x16xf32>
    %34 = vector.shape_cast %33 : vector<16x16xf32> to vector<16x16x1xf32>
    %cst_9 = arith.constant dense<0xFF800000> : vector<16x1xf32>
    %35 = vector.multi_reduction <maximumf>, %34, %cst_9 [0] : vector<16x16x1xf32> to vector<16x1xf32>
    %36 = vector.shape_cast %35 : vector<16x1xf32> to vector<1x16x1xf32>
    %cst_10 = arith.constant 8.000000e+00 : f32
    %37 = vector.broadcast %cst_10 : f32 to vector<1x16x1xf32>
    %38 = arith.subf %36, %37 : vector<1x16x1xf32>
    %39 = vector.broadcast %38 : vector<1x16x1xf32> to vector<16x16x128xf32>
    %40 = arith.maximumf %32, %39 : vector<16x16x128xf32>
    %cst_11 = arith.constant 4.000000e+00 : f32
    %41 = vector.broadcast %cst_11 : f32 to vector<16x16x128xf32>
    %42 = arith.addf %40, %41 : vector<16x16x128xf32>
    %cst_12 = arith.constant 2.500000e-01 : f32
    %43 = vector.broadcast %cst_12 : f32 to vector<16x16x128xf32>
    %44 = arith.mulf %42, %43 : vector<16x16x128xf32>
    %45 = vector.shape_cast %44 : vector<16x16x128xf32> to vector<256x128xf32>
    %46 = arith.truncf %45 : vector<256x128xf32> to vector<256x128xbf16>
    %c0_13 = arith.constant 0 : index
    %c0_14 = arith.constant 0 : index
    %47 = vector.load %arg4[%c0_13, %c0_14] : memref<256x128xbf16, #tpu.memory_space<vmem>>, vector<256x128xbf16>
    tpu.vector_store %arg4[%c0_13, %c0_14], %46 {strides = array<i32>} : memref<256x128xbf16, #tpu.memory_space<vmem>>, vector<256x128xbf16>,
    return
  }
  func.func @transform_0(%arg0: i32) -> (i32, i32) {
    %c0_i32 = arith.constant 0 : i32
    %c0_i32_0 = arith.constant 0 : i32
    return %arg0, %c0_i32 : i32, i32
  }
  func.func @transform_1(%arg0: i32) -> (i32, i32) {
    %c0_i32 = arith.constant 0 : i32
    %c0_i32_0 = arith.constant 0 : i32
    %c0_i32_1 = arith.constant 0 : i32
    return %c0_i32, %c0_i32_0 : i32, i32
  }
  func.func @transform_2(%arg0: i32) -> (i32, i32) {
    %c0_i32 = arith.constant 0 : i32
    %c0_i32_0 = arith.constant 0 : i32
    %c0_i32_1 = arith.constant 0 : i32
    return %c0_i32, %c0_i32_0 : i32, i32
  }
  func.func @transform_3(%arg0: i32) -> (i32, i32) {
    %c0_i32 = arith.constant 0 : i32
    %c0_i32_0 = arith.constant 0 : i32
    return %arg0, %c0_i32 : i32, i32
  }
}

</mosaic_0001>

<llo_original>
// kernel: tpu_custom_call.1
$region0: #{tpu_custom_call.1}
  #allocation0 [shape = 'u32[]', space=smem, size = 0x4, offset = 0x4, fixed_abs, tag = 'smem constant byte address 0x4 - core index']
  #allocation1 [shape = 'u32[72,128]{1,0:T(1,128)}', space=vmem, size = 0x9000, scoped, tag = 'internal scratch']
  %s0 = inlined_call_operand.hbm [shape: bf16[64,1280], index: 0, kind: input, shape index: {}]
  %s1 = inlined_call_operand.hbm [shape: bf16[256,256], index: 1, kind: input, shape index: {}]
  %s2 = inlined_call_operand.hbm [shape: f32[128,128], index: 2, kind: input, shape index: {}]
  %s3 = inlined_call_operand.hbm [shape: bf16[1024,128], index: 3, kind: output, shape index: {}]
  %s4 = sld [smem:[#allocation0]]
  $region57: #{tpu_custom_call.1} parent=0
    _
  %s6 = ssub.s32 1, %s4
  %s7 = scalar_select 0, %s6, %s4
  $region1: #{tpu_custom_call.1} parent=0
    #allocation2 [shape = 'u8[81920]{0}', space=vmem, size = 0x14000, scoped, tag = 'input window, operand 0']
    #allocation3 [shape = 's32[2]{0}', space=sflag, size = 0x8, scoped, tag = 'scoped memory for tpu_custom_call.1']
    #allocation4 [shape = 's32[2]{0}', space=sflag, size = 0x8, scoped, tag = 'scoped memory for tpu_custom_call.1']
    #allocation5 [shape = 'u8[131072]{0}', space=vmem, size = 0x20000, scoped, tag = 'input window, operand 1, single buffered']
    #allocation6 [shape = 's32[1]{0}', space=sflag, size = 0x4, scoped, tag = 'scoped memory for tpu_custom_call.1']
    #allocation7 [shape = 'u8[65536]{0}', space=vmem, size = 0x10000, scoped, tag = 'input window, operand 2, single buffered']
    #allocation8 [shape = 'u8[131072]{0}', space=vmem, size = 0x20000, scoped, tag = 'output window, operand 0']
    %8 = vsyncpa [#allocation3], 0
    %s9 = scalar_lea.sflag [#allocation3], 1
    %10 = vsyncpa %s9, 0
    %11 = vsyncpa [#allocation6], 0
    %12 = vsyncpa [#allocation4], 0
    %s13 = scalar_lea.sflag [#allocation4], 1
    %14 = vsyncpa %s13, 0
    loop: start=0, step=1, limit=6
    $region2: #{tpu_custom_call.1} parent=1 // loop_pre_header
      _
    $region3: #{tpu_custom_call.1} parent=1 // loop_header
      %s16 = sphi 0, %s20
      %p17 = scmp.ge.s32.totalorder %s16, 6
      %s26 = sphi 0, %s28
      %s29 = sphi 0, %s26
      %s30 = sphi 0, %s29
      %s46 = sphi 0, %s30
      %s50 = sphi 0, %s50
      %s52 = sphi 0, %s50
      %s53 = sphi 0, %s52
      %s67 = sphi 0, %s53
      %s71 = sphi 0, %s71
      %s73 = sphi 0, %s71
      %s74 = sphi 0, %s73
      %s88 = sphi 0, %s74
      %s94 = sphi 0, %s96
      %s97 = sphi 0, %s94
      %s98 = sphi 0, %s97
      %s114 = sphi 0, %s98
    $region4: #{tpu_custom_call.1} parent=1 // loop_header_branch
      %19 = sbr.rel (%p17) target = $region8
    $region5: #{tpu_custom_call.1} parent=1 // loop_body
      %s21 = ssub.s32 %s16, 1
      %s22 = ssub.s32 %s16, 2
      %s23 = sadd.s32 %s16, 1
      %s24 = ssub.s32 %s16, %s23
      %p25 = scmp.eq.s32.totalorder %s24, 0
      %s27 = sadd.s32 %s26, 1
      %s28 = scalar_select %p25, %s26, %s27
      %p31 = pneg %p25
      %p32 = scmp.eq.s32.totalorder %s16, 3
      %p33 = por %p31, %p32
      %p34 = scmp.ne.s32.totalorder %s26, %s29
      %p35 = scmp.eq.s32.totalorder %s16, 0
      %p36 = por %p34, %p35
      %p37 = scmp.ne.s32.totalorder %s26, %s29
      %p38 = scmp.eq.s32.totalorder %s21, 3
      %p39 = por %p37, %p38
      %p40 = scmp.ne.s32.totalorder %s29, %s30
      %p41 = scmp.eq.s32.totalorder %s21, 0
      %p42 = por %p40, %p41
      %p43 = scmp.ne.s32.totalorder %s29, %s30
      %p44 = scmp.eq.s32.totalorder %s22, 3
      %p45 = por %p43, %p44
      %p47 = scmp.ne.s32.totalorder %s30, %s46
      %p48 = scmp.eq.s32.totalorder %s22, 0
      %p49 = por %p47, %p48
      %s51 = sadd.s32 %s50, 1
      %p54 = scmp.eq.s32.totalorder %s16, 3
      %p55 = scmp.ne.s32.totalorder %s50, %s52
      %p56 = scmp.eq.s32.totalorder %s16, 0
      %p57 = por %p55, %p56
      %p58 = scmp.ne.s32.totalorder %s50, %s52
      %p59 = scmp.eq.s32.totalorder %s21, 3
      %p60 = por %p58, %p59
      %p61 = scmp.ne.s32.totalorder %s52, %s53
      %p62 = scmp.eq.s32.totalorder %s21, 0
      %p63 = por %p61, %p62
      %p64 = scmp.ne.s32.totalorder %s52, %s53
      %p65 = scmp.eq.s32.totalorder %s22, 3
      %p66 = por %p64, %p65
      %p68 = scmp.ne.s32.totalorder %s53, %s67
      %p69 = scmp.eq.s32.totalorder %s22, 0
      %p70 = por %p68, %p69
      %s72 = sadd.s32 %s71, 1
      %p75 = scmp.eq.s32.totalorder %s16, 3
      %p76 = scmp.ne.s32.totalorder %s71, %s73
      %p77 = scmp.eq.s32.totalorder %s16, 0
      %p78 = por %p76, %p77
      %p79 = scmp.ne.s32.totalorder %s71, %s73
      %p80 = scmp.eq.s32.totalorder %s21, 3
      %p81 = por %p79, %p80
      %p82 = scmp.ne.s32.totalorder %s73, %s74
      %p83 = scmp.eq.s32.totalorder %s21, 0
      %p84 = por %p82, %p83
      %p85 = scmp.ne.s32.totalorder %s73, %s74
      %p86 = scmp.eq.s32.totalorder %s22, 3
      %p87 = por %p85, %p86
      %p89 = scmp.ne.s32.totalorder %s74, %s88
      %p90 = scmp.eq.s32.totalorder %s22, 0
      %p91 = por %p89, %p90
      %s92 = ssub.s32 %s16, %s23
      %p93 = scmp.eq.s32.totalorder %s92, 0
      %s95 = sadd.s32 %s94, 1
      %s96 = scalar_select %p93, %s94, %s95
      %p99 = pneg %p93
      %p100 = scmp.eq.s32.totalorder %s16, 3
      %p101 = por %p99, %p100
      %p102 = scmp.ne.s32.totalorder %s94, %s97
      %p103 = scmp.eq.s32.totalorder %s16, 0
      %p104 = por %p102, %p103
      %p105 = scmp.ne.s32.totalorder %s94, %s97
      %p106 = scmp.eq.s32.totalorder %s21, 3
      %p107 = por %p105, %p106
      %p108 = scmp.ne.s32.totalorder %s97, %s98
      %p109 = scmp.eq.s32.totalorder %s21, 0
      %p110 = por %p108, %p109
      %p111 = scmp.ne.s32.totalorder %s97, %s98
      %p112 = scmp.eq.s32.totalorder %s22, 3
      %p113 = por %p111, %p112
      %p115 = scmp.ne.s32.totalorder %s98, %s114
      %p116 = scmp.eq.s32.totalorder %s22, 0
      %p117 = por %p115, %p116
      %p118 = scmp.le.s32.totalorder 1, %s16
      %p119 = scmp.lt.s32.totalorder %s16, 5
      %p120 = pnand %p118, %p119
      %p121 = pneg %p120
      // Predicated region
      $region9: #{tpu_custom_call.1} parent=5 // pred_check
        _
      $region10: #{tpu_custom_call.1} parent=5 // pred_check_branch
        %123 = sbr.rel (%p120) target = $region12
      $region11: #{tpu_custom_call.1} parent=5 // pred_region
        %s124 = ssub.s32 %s16, 1
        // Predicated region
        $region13: #{tpu_custom_call.1} parent=11 // pred_check
          %p125 = pneg %p63
        $region14: #{tpu_custom_call.1} parent=11 // pred_check_branch
          %127 = sbr.rel (%p125) target = $region16
        $region15: #{tpu_custom_call.1} parent=11 // pred_region
          %129 = vsyncadd [#allocation6], 0
          %s130 = sshll.u32 %s1, 4
          %s131 = int_to_ptr.hbm [resolvable:$true] %s130
          %s132 = sshll.u32 [#allocation5], 4
          %s133 = int_to_ptr.vmem [resolvable:$true] %s132
          %138 = dma.hbm_to_vmem [thread:$0]  %s131, 4096, %s133, [#allocation6], 128, 128, 8
        $region16: #{tpu_custom_call.1} parent=11 // pred_fallthru
          _
        // Predicated region
        $region17: #{tpu_custom_call.1} parent=11 // pred_check
          %p139 = pneg %p84
        $region18: #{tpu_custom_call.1} parent=11 // pred_check_branch
          %141 = sbr.rel (%p139) target = $region20
        $region19: #{tpu_custom_call.1} parent=11 // pred_region
          %143 = vsyncadd [#allocation6], 0
          %s144 = sshll.u32 %s2, 4
          %s145 = int_to_ptr.hbm [resolvable:$true] %s144
          %s146 = sshll.u32 [#allocation7], 4
          %s147 = int_to_ptr.vmem [resolvable:$true] %s146
          %152 = dma.hbm_to_vmem [thread:$0]  %s145, 2048, %s147, [#allocation6], 128, 128, 8
        $region20: #{tpu_custom_call.1} parent=11 // pred_fallthru
          _
      $region12: #{tpu_custom_call.1} parent=5 // pred_fallthru
        _
      %p153 = scmp.lt.s32.totalorder %s16, 4
      // Predicated region
      $region21: #{tpu_custom_call.1} parent=5 // pred_check
        %p154 = pneg %p153
      $region22: #{tpu_custom_call.1} parent=5 // pred_check_branch
        %156 = sbr.rel (%p154) target = $region24
      $region23: #{tpu_custom_call.1} parent=5 // pred_region
        // Predicated region
        $region25: #{tpu_custom_call.1} parent=23 // pred_check
          %p157 = pneg %p36
        $region26: #{tpu_custom_call.1} parent=23 // pred_check_branch
          %159 = sbr.rel (%p157) target = $region28
        $region27: #{tpu_custom_call.1} parent=23 // pred_region
          %s160 = sand.u32 %s26, 1
          %s161 = scalar_lea.sflag [#allocation3], %s160
          %s162 = sand.u32 %s26, 1
          %s163 = smul.addr %s162, 80
          %s164 = scalar_lea.vmem [#allocation2], %s163
          %s165 = smul.u32 2, %s16
          %167 = vsyncadd %s161, 0
          %s168 = smul.addr %s165, 10
          %s169 = smul.addr %s168, 4
          %s170 = scalar_lea.hbm %s0, %s169
          %s171 = sshll.u32 %s170, 4
          %s172 = int_to_ptr.hbm [resolvable:$true] %s171
          %s173 = sshll.u32 %s164, 4
          %s174 = int_to_ptr.vmem [resolvable:$true] %s173
          %179 = dma.hbm_to_vmem [thread:$0]  %s172, 1280, %s174, %s161, 640, 640, 40
        $region28: #{tpu_custom_call.1} parent=23 // pred_fallthru
          _
      $region24: #{tpu_custom_call.1} parent=5 // pred_fallthru
        _
      %p180 = scmp.le.s32.totalorder 1, %s16
      %p181 = scmp.lt.s32.totalorder %s16, 5
      %p182 = pnand %p180, %p181
      %p183 = pneg %p182
      // Predicated region
      $region29: #{tpu_custom_call.1} parent=5 // pred_check
        _
      $region30: #{tpu_custom_call.1} parent=5 // pred_check_branch
        %185 = sbr.rel (%p182) target = $region32
      $region31: #{tpu_custom_call.1} parent=5 // pred_region
        %s186 = ssub.s32 %s16, 1
        %s187 = sand.u32 %s29, 1
        %s188 = scalar_lea.sflag [#allocation3], %s187
        %s189 = sand.u32 %s29, 1
        %s190 = smul.addr %s189, 80
        %s191 = scalar_lea.vmem [#allocation2], %s190
        // Predicated region
        $region33: #{tpu_custom_call.1} parent=31 // pred_check
          %p192 = pneg %p42
        $region34: #{tpu_custom_call.1} parent=31 // pred_check_branch
          %194 = sbr.rel (%p192) target = $region36
        $region35: #{tpu_custom_call.1} parent=31 // pred_region
          %196 = dma.done %s188, 1280
        $region36: #{tpu_custom_call.1} parent=31 // pred_fallthru
          _
        // Predicated region
        $region37: #{tpu_custom_call.1} parent=31 // pred_check
          %p197 = pneg %p63
        $region38: #{tpu_custom_call.1} parent=31 // pred_check_branch
          %199 = sbr.rel (%p197) target = $region40
        $region39: #{tpu_custom_call.1} parent=31 // pred_region
          %201 = dma.done [#allocation6], 4096
        $region40: #{tpu_custom_call.1} parent=31 // pred_fallthru
          _
        // Predicated region
        $region41: #{tpu_custom_call.1} parent=31 // pred_check
          %p202 = pneg %p84
        $region42: #{tpu_custom_call.1} parent=31 // pred_check_branch
          %204 = sbr.rel (%p202) target = $region44
        $region43: #{tpu_custom_call.1} parent=31 // pred_region
          %206 = dma.done [#allocation6], 2048
        $region44: #{tpu_custom_call.1} parent=31 // pred_fallthru
          _
        %s207 = sand.u32 %s29, 1
        %s208 = scalar_lea.sflag [#allocation3], %s207
        %s209 = sand.u32 %s29, 1
        %s210 = smul.addr %s209, 80
        %s211 = scalar_lea.vmem [#allocation2], %s210
        %p212 = pneg %p42
        %p213 = pneg %p39
        %p214 = pneg %p63
        %p215 = pneg %p60
        %p216 = pneg %p84
        %p217 = pneg %p81
        %p218 = pneg %p110
        %p219 = pneg %p107
        %s220 = sand.u32 %s97, 1
        %s221 = scalar_lea.sflag [#allocation4], %s220
        %s222 = sand.u32 %s97, 1
        %s223 = smul.addr %s222, 128
        %s224 = scalar_lea.vmem [#allocation8], %s223
        %s225 = smul.u32 2, %s21
        %s226 = smul.u32 32, %s21
        %v227 = vld [vmem:[%s191] sm:$0xff]
        %v228 = vld [vmem:[%s191 + $0x8] sm:$0xff]
        %v229 = vld [vmem:[%s191 + $0x10] sm:$0xff]
        %v230 = vld [vmem:[%s191 + $0x18] sm:$0xff]
        %v231 = vld [vmem:[%s191 + $0x20] sm:$0xff]
        %v232 = vld [vmem:[%s191 + $0x28] sm:$0xff]
        %v233 = vld [vmem:[%s191 + $0x30] sm:$0xff]
        %v234 = vld [vmem:[%s191 + $0x38] sm:$0xff]
        %v235 = vld [vmem:[%s191 + $0x40] sm:$0xff]
        %v236 = vld [vmem:[%s191 + $0x48] sm:$0xff]
        %v239 = vunpack.c.l.b16 %v227
        %v240 = vunpack.c.h.b16 %v227
        %v241 = vunpack.c.l.b16 %v232
        %v242 = vunpack.c.h.b16 %v232
        %v243 = vpack.c.b16 %v241, %v239
        %v244 = vpack.c.b16 %v242, %v240
        %v249 = vunpack.c.l.b16 %v228
        %v250 = vunpack.c.l.b16 %v233
        %v251 = vpack.c.b16 %v250, %v249
        %252 = vrot.lane.b32.xlu0 %v243, 64
        %v253 = vpop.permute.xlu0 %252
        %254 = vrot.lane.b32.xlu0 %v244, 64
        %v255 = vpop.permute.xlu0 %254
        %256 = vrot.lane.b32.xlu0 %v251, 64
        %v257 = vpop.permute.xlu0 %256
        %vm258 = vcmask 523264
        %v259 = vsel %vm258, %v253, %v255
        %v260 = vsel %vm258, %v255, %v257
        %v264 = vunpack.c.h.b16 %v228
        %v265 = vunpack.c.h.b16 %v233
        %v266 = vpack.c.b16 %v265, %v264
        %267 = vrot.lane.b32.xlu0 %v266, 64
        %v268 = vpop.permute.xlu0 %267
        %v269 = vsel %vm258, %v257, %v268
        %v274 = vunpack.c.l.b16 %v229
        %v275 = vunpack.c.l.b16 %v234
        %v276 = vpack.c.b16 %v275, %v274
        %277 = vrot.lane.b32.xlu0 %v276, 64
        %v278 = vpop.permute.xlu0 %277
        %v279 = vsel %vm258, %v268, %v278
        %v282 = vunpack.c.h.b16 %v229
        %v283 = vunpack.c.h.b16 %v234
        %v284 = vpack.c.b16 %v283, %v282
        %285 = vrot.lane.b32.xlu0 %v284, 64
        %v286 = vpop.permute.xlu0 %285
        %v287 = vsel %vm258, %v278, %v286
        %v292 = vunpack.c.l.b16 %v230
        %v293 = vunpack.c.l.b16 %v235
        %v294 = vpack.c.b16 %v293, %v292
        %295 = vrot.lane.b32.xlu0 %v294, 64
        %v296 = vpop.permute.xlu0 %295
        %v297 = vsel %vm258, %v286, %v296
        %v300 = vunpack.c.h.b16 %v230
        %v301 = vunpack.c.h.b16 %v235
        %v302 = vpack.c.b16 %v301, %v300
        %303 = vrot.lane.b32.xlu0 %v302, 64
        %v304 = vpop.permute.xlu0 %303
        %v305 = vsel %vm258, %v296, %v304
        %v310 = vunpack.c.l.b16 %v231
        %v311 = vunpack.c.l.b16 %v236
        %v312 = vpack.c.b16 %v311, %v310
        %313 = vrot.lane.b32.xlu0 %v312, 64
        %v314 = vpop.permute.xlu0 %313
        %v315 = vsel %vm258, %v304, %v314
        %v318 = vunpack.c.h.b16 %v231
        %v319 = vunpack.c.h.b16 %v236
        %v320 = vpack.c.b16 %v319, %v318
        %321 = vrot.lane.b32.xlu0 %v320, 64
        %v322 = vpop.permute.xlu0 %321
        %v323 = vsel %vm258, %v314, %v322
        %v325 = vld [vmem:[#allocation5] sm:$0xff]
        %v326 = vld [vmem:[#allocation5 + $0x8] sm:$0xff]
        %v327 = vld [vmem:[#allocation5 + $0x10] sm:$0xff]
        %v328 = vld [vmem:[#allocation5 + $0x18] sm:$0xff]
        %v329 = vld [vmem:[#allocation5 + $0x20] sm:$0xff]
        %v330 = vld [vmem:[#allocation5 + $0x28] sm:$0xff]
        %v331 = vld [vmem:[#allocation5 + $0x30] sm:$0xff]
        %v332 = vld [vmem:[#allocation5 + $0x38] sm:$0xff]
        %v333 = vld [vmem:[#allocation5 + $0x40] sm:$0xff]
        %v334 = vld [vmem:[#allocation5 + $0x48] sm:$0xff]
        %v335 = vld [vmem:[#allocation5 + $0x50] sm:$0xff]
        %v336 = vld [vmem:[#allocation5 + $0x58] sm:$0xff]
        %v337 = vld [vmem:[#allocation5 + $0x60] sm:$0xff]
        %v338 = vld [vmem:[#allocation5 + $0x68] sm:$0xff]
        %v339 = vld [vmem:[#allocation5 + $0x70] sm:$0xff]
        %v340 = vld [vmem:[#allocation5 + $0x78] sm:$0xff]
        %v341 = vld [vmem:[#allocation5 + $0x80] sm:$0xff]
        %v342 = vld [vmem:[#allocation5 + $0x88] sm:$0xff]
        %v343 = vld [vmem:[#allocation5 + $0x90] sm:$0xff]
        %v344 = vld [vmem:[#allocation5 + $0x98] sm:$0xff]
        %v345 = vld [vmem:[#allocation5 + $0xa0] sm:$0xff]
        %v346 = vld [vmem:[#allocation5 + $0xa8] sm:$0xff]
        %v347 = vld [vmem:[#allocation5 + $0xb0] sm:$0xff]
        %v348 = vld [vmem:[#allocation5 + $0xb8] sm:$0xff]
        %v349 = vld [vmem:[#allocation5 + $0xc0] sm:$0xff]
        %v350 = vld [vmem:[#allocation5 + $0xc8] sm:$0xff]
        %v351 = vld [vmem:[#allocation5 + $0xd0] sm:$0xff]
        %v352 = vld [vmem:[#allocation5 + $0xd8] sm:$0xff]
        %v353 = vld [vmem:[#allocation5 + $0xe0] sm:$0xff]
        %v354 = vld [vmem:[#allocation5 + $0xe8] sm:$0xff]
        %v355 = vld [vmem:[#allocation5 + $0xf0] sm:$0xff]
        %v356 = vld [vmem:[#allocation5 + $0xf8] sm:$0xff]
        %v389 = vunpack.c.l.b16 %v325
        %v390 = vunpack.c.h.b16 %v325
        %v391 = vunpack.c.l.b16 %v326
        %v392 = vunpack.c.h.b16 %v326
        %v393 = vunpack.c.l.b16 %v327
        %v394 = vunpack.c.h.b16 %v327
        %v395 = vunpack.c.l.b16 %v328
        %v396 = vunpack.c.h.b16 %v328
        %v397 = vunpack.c.l.b16 %v329
        %v398 = vunpack.c.h.b16 %v329
        %v399 = vunpack.c.l.b16 %v330
        %v400 = vunpack.c.h.b16 %v330
        %v401 = vunpack.c.l.b16 %v331
        %v402 = vunpack.c.h.b16 %v331
        %v403 = vunpack.c.l.b16 %v332
        %v404 = vunpack.c.h.b16 %v332
        %v405 = vunpack.c.l.b16 %v333
        %v406 = vunpack.c.h.b16 %v333
        %v407 = vunpack.c.l.b16 %v334
        %v408 = vunpack.c.h.b16 %v334
        %v409 = vunpack.c.l.b16 %v335
        %v410 = vunpack.c.h.b16 %v335
        %v411 = vunpack.c.l.b16 %v336
        %v412 = vunpack.c.h.b16 %v336
        %v413 = vunpack.c.l.b16 %v337
        %v414 = vunpack.c.h.b16 %v337
        %v415 = vunpack.c.l.b16 %v338
        %v416 = vunpack.c.h.b16 %v338
        %v417 = vunpack.c.l.b16 %v339
        %v418 = vunpack.c.h.b16 %v339
        %v419 = vunpack.c.l.b16 %v340
        %v420 = vunpack.c.h.b16 %v340
        %v421 = vunpack.c.l.b16 %v341
        %v422 = vunpack.c.h.b16 %v341
        %v423 = vunpack.c.l.b16 %v342
        %v424 = vunpack.c.h.b16 %v342
        %v425 = vunpack.c.l.b16 %v343
        %v426 = vunpack.c.h.b16 %v343
        %v427 = vunpack.c.l.b16 %v344
        %v428 = vunpack.c.h.b16 %v344
        %v429 = vunpack.c.l.b16 %v345
        %v430 = vunpack.c.h.b16 %v345
        %v431 = vunpack.c.l.b16 %v346
        %v432 = vunpack.c.h.b16 %v346
        %v433 = vunpack.c.l.b16 %v347
        %v434 = vunpack.c.h.b16 %v347
        %v435 = vunpack.c.l.b16 %v348
        %v436 = vunpack.c.h.b16 %v348
        %v437 = vunpack.c.l.b16 %v349
        %v438 = vunpack.c.h.b16 %v349
        %v439 = vunpack.c.l.b16 %v350
        %v440 = vunpack.c.h.b16 %v350
        %v441 = vunpack.c.l.b16 %v351
        %v442 = vunpack.c.h.b16 %v351
        %v443 = vunpack.c.l.b16 %v352
        %v444 = vunpack.c.h.b16 %v352
        %v445 = vunpack.c.l.b16 %v353
        %v446 = vunpack.c.h.b16 %v353
        %v447 = vunpack.c.l.b16 %v354
        %v448 = vunpack.c.h.b16 %v354
        %v449 = vunpack.c.l.b16 %v355
        %v450 = vunpack.c.h.b16 %v355
        %v451 = vunpack.c.l.b16 %v356
        %v452 = vunpack.c.h.b16 %v356
        %v453 = vpack.c.b16 %v391, %v389
        %v454 = vpack.c.b16 %v392, %v390
        %v455 = vpack.c.b16 %v395, %v393
        %v456 = vpack.c.b16 %v396, %v394
        %v457 = vpack.c.b16 %v399, %v397
        %v458 = vpack.c.b16 %v400, %v398
        %v459 = vpack.c.b16 %v403, %v401
        %v460 = vpack.c.b16 %v404, %v402
        %v461 = vpack.c.b16 %v407, %v405
        %v462 = vpack.c.b16 %v408, %v406
        %v463 = vpack.c.b16 %v411, %v409
        %v464 = vpack.c.b16 %v412, %v410
        %v465 = vpack.c.b16 %v415, %v413
        %v466 = vpack.c.b16 %v416, %v414
        %v467 = vpack.c.b16 %v419, %v417
        %v468 = vpack.c.b16 %v420, %v418
        %v469 = vpack.c.b16 %v423, %v421
        %v470 = vpack.c.b16 %v424, %v422
        %v471 = vpack.c.b16 %v427, %v425
        %v472 = vpack.c.b16 %v428, %v426
        %v473 = vpack.c.b16 %v431, %v429
        %v474 = vpack.c.b16 %v432, %v430
        %v475 = vpack.c.b16 %v435, %v433
        %v476 = vpack.c.b16 %v436, %v434
        %v477 = vpack.c.b16 %v439, %v437
        %v478 = vpack.c.b16 %v440, %v438
        %v479 = vpack.c.b16 %v443, %v441
        %v480 = vpack.c.b16 %v444, %v442
        %v481 = vpack.c.b16 %v447, %v445
        %v482 = vpack.c.b16 %v448, %v446
        %v483 = vpack.c.b16 %v451, %v449
        %v484 = vpack.c.b16 %v452, %v450
        %517 = vmatpush.bf16.msra.mxu0 %v467
        %518 = vmatpush.bf16.msra.mxu0 %v465
        %519 = vmatpush.bf16.msra.mxu0 %v463
        %520 = vmatpush.bf16.msra.mxu0 %v461
        %521 = vmatpush.bf16.msra.mxu0 %v459
        %522 = vmatpush.bf16.msra.mxu0 %v457
        %523 = vmatpush.bf16.msra.mxu0 %v455
        %524 = vmatpush.bf16.msra.mxu0 %v453
        %525 = vmatmul.bf16.gmra.mxu0 %v243
        %v526 = vpop.f32.mrf.mxu0
        %v527 = vadd.f32 0.0, %v526
        %v528 = vpop.f32.mrf.mxu0
        %v529 = vadd.f32 0.0, %v528
        %530 = vmatmul.bf16.gmra.mxu0 %v259
        %v531 = vpop.f32.mrf.mxu0
        %v532 = vadd.f32 0.0, %v531
        %v533 = vpop.f32.mrf.mxu0
        %v534 = vadd.f32 0.0, %v533
        %535 = vmatmul.bf16.gmra.mxu0 %v244
        %v536 = vpop.f32.mrf.mxu0
        %v537 = vadd.f32 0.0, %v536
        %v538 = vpop.f32.mrf.mxu0
        %v539 = vadd.f32 0.0, %v538
        %540 = vmatmul.bf16.gmra.mxu0 %v260
        %v541 = vpop.f32.mrf.mxu0
        %v542 = vadd.f32 0.0, %v541
        %v543 = vpop.f32.mrf.mxu0
        %v544 = vadd.f32 0.0, %v543
        %545 = vmatmul.bf16.gmra.mxu0 %v251
        %v546 = vpop.f32.mrf.mxu0
        %v547 = vadd.f32 0.0, %v546
        %v548 = vpop.f32.mrf.mxu0
        %v549 = vadd.f32 0.0, %v548
        %550 = vmatmul.bf16.gmra.mxu0 %v269
        %v551 = vpop.f32.mrf.mxu0
        %v552 = vadd.f32 0.0, %v551
        %v553 = vpop.f32.mrf.mxu0
        %v554 = vadd.f32 0.0, %v553
        %555 = vmatmul.bf16.gmra.mxu0 %v266
        %v556 = vpop.f32.mrf.mxu0
        %v557 = vadd.f32 0.0, %v556
        %v558 = vpop.f32.mrf.mxu0
        %v559 = vadd.f32 0.0, %v558
        %560 = vmatmul.bf16.gmra.mxu0 %v279
        %v561 = vpop.f32.mrf.mxu0
        %v562 = vadd.f32 0.0, %v561
        %v563 = vpop.f32.mrf.mxu0
        %v564 = vadd.f32 0.0, %v563
        %565 = vmatmul.bf16.gmra.mxu0 %v276
        %v566 = vpop.f32.mrf.mxu0
        %v567 = vadd.f32 0.0, %v566
        %v568 = vpop.f32.mrf.mxu0
        %v569 = vadd.f32 0.0, %v568
        %570 = vmatmul.bf16.gmra.mxu0 %v287
        %v571 = vpop.f32.mrf.mxu0
        %v572 = vadd.f32 0.0, %v571
        %v573 = vpop.f32.mrf.mxu0
        %v574 = vadd.f32 0.0, %v573
        %575 = vmatmul.bf16.gmra.mxu0 %v284
        %v576 = vpop.f32.mrf.mxu0
        %v577 = vadd.f32 0.0, %v576
        %v578 = vpop.f32.mrf.mxu0
        %v579 = vadd.f32 0.0, %v578
        %580 = vmatmul.bf16.gmra.mxu0 %v297
        %v581 = vpop.f32.mrf.mxu0
        %v582 = vadd.f32 0.0, %v581
        %v583 = vpop.f32.mrf.mxu0
        %v584 = vadd.f32 0.0, %v583
        %585 = vmatmul.bf16.gmra.mxu0 %v294
        %v586 = vpop.f32.mrf.mxu0
        %v587 = vadd.f32 0.0, %v586
        %v588 = vpop.f32.mrf.mxu0
        %v589 = vadd.f32 0.0, %v588
        %590 = vmatmul.bf16.gmra.mxu0 %v305
        %v591 = vpop.f32.mrf.mxu0
        %v592 = vadd.f32 0.0, %v591
        %v593 = vpop.f32.mrf.mxu0
        %v594 = vadd.f32 0.0, %v593
        %595 = vmatmul.bf16.gmra.mxu0 %v302
        %v596 = vpop.f32.mrf.mxu0
        %v597 = vadd.f32 0.0, %v596
        %v598 = vpop.f32.mrf.mxu0
        %v599 = vadd.f32 0.0, %v598
        %600 = vmatmul.bf16.gmra.mxu0 %v315
        %v601 = vpop.f32.mrf.mxu0
        %v602 = vadd.f32 0.0, %v601
        %v603 = vpop.f32.mrf.mxu0
        %v604 = vadd.f32 0.0, %v603
        %605 = vdwg.mxu0
        %606 = vmatpush.bf16.msra.mxu0 %v483
        %607 = vmatpush.bf16.msra.mxu0 %v481
        %608 = vmatpush.bf16.msra.mxu0 %v479
        %609 = vmatpush.bf16.msra.mxu0 %v477
        %610 = vmatpush.bf16.msra.mxu0 %v475
        %611 = vmatpush.bf16.msra.mxu0 %v473
        %612 = vmatpush.bf16.msra.mxu0 %v471
        %613 = vmatpush.bf16.msra.mxu0 %v469
        %614 = vmatmul.bf16.gmra.mxu0 %v244
        %v615 = vpop.f32.mrf.mxu0
        %v616 = vadd.f32 %v527, %v615
        %v617 = vpop.f32.mrf.mxu0
        %v618 = vadd.f32 %v529, %v617
        %619 = vmatmul.bf16.gmra.mxu0 %v260
        %v620 = vpop.f32.mrf.mxu0
        %v621 = vadd.f32 %v532, %v620
        %v622 = vpop.f32.mrf.mxu0
        %v623 = vadd.f32 %v534, %v622
        %624 = vmatmul.bf16.gmra.mxu0 %v251
        %v625 = vpop.f32.mrf.mxu0
        %v626 = vadd.f32 %v537, %v625
        %v627 = vpop.f32.mrf.mxu0
        %v628 = vadd.f32 %v539, %v627
        %629 = vmatmul.bf16.gmra.mxu0 %v269
        %v630 = vpop.f32.mrf.mxu0
        %v631 = vadd.f32 %v542, %v630
        %v632 = vpop.f32.mrf.mxu0
        %v633 = vadd.f32 %v544, %v632
        %634 = vmatmul.bf16.gmra.mxu0 %v266
        %v635 = vpop.f32.mrf.mxu0
        %v636 = vadd.f32 %v547, %v635
        %v637 = vpop.f32.mrf.mxu0
        %v638 = vadd.f32 %v549, %v637
        %639 = vmatmul.bf16.gmra.mxu0 %v279
        %v640 = vpop.f32.mrf.mxu0
        %v641 = vadd.f32 %v552, %v640
        %v642 = vpop.f32.mrf.mxu0
        %v643 = vadd.f32 %v554, %v642
        %644 = vmatmul.bf16.gmra.mxu0 %v276
        %v645 = vpop.f32.mrf.mxu0
        %v646 = vadd.f32 %v557, %v645
        %v647 = vpop.f32.mrf.mxu0
        %v648 = vadd.f32 %v559, %v647
        %649 = vmatmul.bf16.gmra.mxu0 %v287
        %v650 = vpop.f32.mrf.mxu0
        %v651 = vadd.f32 %v562, %v650
        %v652 = vpop.f32.mrf.mxu0
        %v653 = vadd.f32 %v564, %v652
        %654 = vmatmul.bf16.gmra.mxu0 %v284
        %v655 = vpop.f32.mrf.mxu0
        %v656 = vadd.f32 %v567, %v655
        %v657 = vpop.f32.mrf.mxu0
        %v658 = vadd.f32 %v569, %v657
        %659 = vmatmul.bf16.gmra.mxu0 %v297
        %v660 = vpop.f32.mrf.mxu0
        %v661 = vadd.f32 %v572, %v660
        %v662 = vpop.f32.mrf.mxu0
        %v663 = vadd.f32 %v574, %v662
        %664 = vmatmul.bf16.gmra.mxu0 %v294
        %v665 = vpop.f32.mrf.mxu0
        %v666 = vadd.f32 %v577, %v665
        %v667 = vpop.f32.mrf.mxu0
        %v668 = vadd.f32 %v579, %v667
        %669 = vmatmul.bf16.gmra.mxu0 %v305
        %v670 = vpop.f32.mrf.mxu0
        %v671 = vadd.f32 %v582, %v670
        %v672 = vpop.f32.mrf.mxu0
        %v673 = vadd.f32 %v584, %v672
        %674 = vmatmul.bf16.gmra.mxu0 %v302
        %v675 = vpop.f32.mrf.mxu0
        %v676 = vadd.f32 %v587, %v675
        %v677 = vpop.f32.mrf.mxu0
        %v678 = vadd.f32 %v589, %v677
        %679 = vmatmul.bf16.gmra.mxu0 %v315
        %v680 = vpop.f32.mrf.mxu0
        %v681 = vadd.f32 %v592, %v680
        %v682 = vpop.f32.mrf.mxu0
        %v683 = vadd.f32 %v594, %v682
        %684 = vmatmul.bf16.gmra.mxu0 %v312
        %v685 = vpop.f32.mrf.mxu0
        %v686 = vadd.f32 %v597, %v685
        %v687 = vpop.f32.mrf.mxu0
        %v688 = vadd.f32 %v599, %v687
        %689 = vmatmul.bf16.gmra.mxu0 %v323
        %v690 = vpop.f32.mrf.mxu0
        %v691 = vadd.f32 %v602, %v690
        %v692 = vpop.f32.mrf.mxu0
        %v693 = vadd.f32 %v604, %v692
        %694 = vdwg.mxu0
        %695 = vmatpush.bf16.msra.mxu0 %v468
        %696 = vmatpush.bf16.msra.mxu0 %v466
        %697 = vmatpush.bf16.msra.mxu0 %v464
        %698 = vmatpush.bf16.msra.mxu0 %v462
        %699 = vmatpush.bf16.msra.mxu0 %v460
        %700 = vmatpush.bf16.msra.mxu0 %v458
        %701 = vmatpush.bf16.msra.mxu0 %v456
        %702 = vmatpush.bf16.msra.mxu0 %v454
        %703 = vmatmul.bf16.gmra.mxu0 %v243
        %v704 = vpop.f32.mrf.mxu0
        %v705 = vadd.f32 0.0, %v704
        %v706 = vpop.f32.mrf.mxu0
        %v707 = vadd.f32 0.0, %v706
        %708 = vmatmul.bf16.gmra.mxu0 %v259
        %v709 = vpop.f32.mrf.mxu0
        %v710 = vadd.f32 0.0, %v709
        %v711 = vpop.f32.mrf.mxu0
        %v712 = vadd.f32 0.0, %v711
        %713 = vmatmul.bf16.gmra.mxu0 %v244
        %v714 = vpop.f32.mrf.mxu0
        %v715 = vadd.f32 0.0, %v714
        %v716 = vpop.f32.mrf.mxu0
        %v717 = vadd.f32 0.0, %v716
        %718 = vmatmul.bf16.gmra.mxu0 %v260
        %v719 = vpop.f32.mrf.mxu0
        %v720 = vadd.f32 0.0, %v719
        %v721 = vpop.f32.mrf.mxu0
        %v722 = vadd.f32 0.0, %v721
        %723 = vmatmul.bf16.gmra.mxu0 %v251
        %v724 = vpop.f32.mrf.mxu0
        %v725 = vadd.f32 0.0, %v724
        %v726 = vpop.f32.mrf.mxu0
        %v727 = vadd.f32 0.0, %v726
        %728 = vmatmul.bf16.gmra.mxu0 %v269
        %v729 = vpop.f32.mrf.mxu0
        %v730 = vadd.f32 0.0, %v729
        %v731 = vpop.f32.mrf.mxu0
        %v732 = vadd.f32 0.0, %v731
        %733 = vmatmul.bf16.gmra.mxu0 %v266
        %v734 = vpop.f32.mrf.mxu0
        %v735 = vadd.f32 0.0, %v734
        %v736 = vpop.f32.mrf.mxu0
        %v737 = vadd.f32 0.0, %v736
        %738 = vmatmul.bf16.gmra.mxu0 %v279
        %v739 = vpop.f32.mrf.mxu0
        %v740 = vadd.f32 0.0, %v739
        %v741 = vpop.f32.mrf.mxu0
        %v742 = vadd.f32 0.0, %v741
        %743 = vmatmul.bf16.gmra.mxu0 %v276
        %v744 = vpop.f32.mrf.mxu0
        %v745 = vadd.f32 0.0, %v744
        %v746 = vpop.f32.mrf.mxu0
        %v747 = vadd.f32 0.0, %v746
        %748 = vmatmul.bf16.gmra.mxu0 %v287
        %v749 = vpop.f32.mrf.mxu0
        %v750 = vadd.f32 0.0, %v749
        %v751 = vpop.f32.mrf.mxu0
        %v752 = vadd.f32 0.0, %v751
        %753 = vmatmul.bf16.gmra.mxu0 %v284
        %v754 = vpop.f32.mrf.mxu0
        %v755 = vadd.f32 0.0, %v754
        %v756 = vpop.f32.mrf.mxu0
        %v757 = vadd.f32 0.0, %v756
        %758 = vmatmul.bf16.gmra.mxu0 %v297
        %v759 = vpop.f32.mrf.mxu0
        %v760 = vadd.f32 0.0, %v759
        %v761 = vpop.f32.mrf.mxu0
        %v762 = vadd.f32 0.0, %v761
        %763 = vmatmul.bf16.gmra.mxu0 %v294
        %v764 = vpop.f32.mrf.mxu0
        %v765 = vadd.f32 0.0, %v764
        %v766 = vpop.f32.mrf.mxu0
        %v767 = vadd.f32 0.0, %v766
        %768 = vmatmul.bf16.gmra.mxu0 %v305
        %v769 = vpop.f32.mrf.mxu0
        %v770 = vadd.f32 0.0, %v769
        %v771 = vpop.f32.mrf.mxu0
        %v772 = vadd.f32 0.0, %v771
        %773 = vmatmul.bf16.gmra.mxu0 %v302
        %v774 = vpop.f32.mrf.mxu0
        %v775 = vadd.f32 0.0, %v774
        %v776 = vpop.f32.mrf.mxu0
        %v777 = vadd.f32 0.0, %v776
        %778 = vmatmul.bf16.gmra.mxu0 %v315
        %v779 = vpop.f32.mrf.mxu0
        %v780 = vadd.f32 0.0, %v779
        %v781 = vpop.f32.mrf.mxu0
        %v782 = vadd.f32 0.0, %v781
        %783 = vdwg.mxu0
        %784 = vmatpush.bf16.msra.mxu0 %v484
        %785 = vmatpush.bf16.msra.mxu0 %v482
        %786 = vmatpush.bf16.msra.mxu0 %v480
        %787 = vmatpush.bf16.msra.mxu0 %v478
        %788 = vmatpush.bf16.msra.mxu0 %v476
        %789 = vmatpush.bf16.msra.mxu0 %v474
        %790 = vmatpush.bf16.msra.mxu0 %v472
        %791 = vmatpush.bf16.msra.mxu0 %v470
        %792 = vmatmul.bf16.gmra.mxu0 %v244
        %v793 = vpop.f32.mrf.mxu0
        %v794 = vadd.f32 %v705, %v793
        %v795 = vpop.f32.mrf.mxu0
        %v796 = vadd.f32 %v707, %v795
        %797 = vmatmul.bf16.gmra.mxu0 %v260
        %v798 = vpop.f32.mrf.mxu0
        %v799 = vadd.f32 %v710, %v798
        %v800 = vpop.f32.mrf.mxu0
        %v801 = vadd.f32 %v712, %v800
        %802 = vmatmul.bf16.gmra.mxu0 %v251
        %v803 = vpop.f32.mrf.mxu0
        %v804 = vadd.f32 %v715, %v803
        %v805 = vpop.f32.mrf.mxu0
        %v806 = vadd.f32 %v717, %v805
        %807 = vmatmul.bf16.gmra.mxu0 %v269
        %v808 = vpop.f32.mrf.mxu0
        %v809 = vadd.f32 %v720, %v808
        %v810 = vpop.f32.mrf.mxu0
        %v811 = vadd.f32 %v722, %v810
        %812 = vmatmul.bf16.gmra.mxu0 %v266
        %v813 = vpop.f32.mrf.mxu0
        %v814 = vadd.f32 %v725, %v813
        %v815 = vpop.f32.mrf.mxu0
        %v816 = vadd.f32 %v727, %v815
        %817 = vmatmul.bf16.gmra.mxu0 %v279
        %v818 = vpop.f32.mrf.mxu0
        %v819 = vadd.f32 %v730, %v818
        %v820 = vpop.f32.mrf.mxu0
        %v821 = vadd.f32 %v732, %v820
        %822 = vmatmul.bf16.gmra.mxu0 %v276
        %v823 = vpop.f32.mrf.mxu0
        %v824 = vadd.f32 %v735, %v823
        %v825 = vpop.f32.mrf.mxu0
        %v826 = vadd.f32 %v737, %v825
        %827 = vmatmul.bf16.gmra.mxu0 %v287
        %v828 = vpop.f32.mrf.mxu0
        %v829 = vadd.f32 %v740, %v828
        %v830 = vpop.f32.mrf.mxu0
        %v831 = vadd.f32 %v742, %v830
        %832 = vmatmul.bf16.gmra.mxu0 %v284
        %v833 = vpop.f32.mrf.mxu0
        %v834 = vadd.f32 %v745, %v833
        %v835 = vpop.f32.mrf.mxu0
        %v836 = vadd.f32 %v747, %v835
        %837 = vmatmul.bf16.gmra.mxu0 %v297
        %v838 = vpop.f32.mrf.mxu0
        %v839 = vadd.f32 %v750, %v838
        %v840 = vpop.f32.mrf.mxu0
        %v841 = vadd.f32 %v752, %v840
        %842 = vmatmul.bf16.gmra.mxu0 %v294
        %v843 = vpop.f32.mrf.mxu0
        %v844 = vadd.f32 %v755, %v843
        %v845 = vpop.f32.mrf.mxu0
        %v846 = vadd.f32 %v757, %v845
        %847 = vmatmul.bf16.gmra.mxu0 %v305
        %v848 = vpop.f32.mrf.mxu0
        %v849 = vadd.f32 %v760, %v848
        %v850 = vpop.f32.mrf.mxu0
        %v851 = vadd.f32 %v762, %v850
        %852 = vmatmul.bf16.gmra.mxu0 %v302
        %v853 = vpop.f32.mrf.mxu0
        %v854 = vadd.f32 %v765, %v853
        %v855 = vpop.f32.mrf.mxu0
        %v856 = vadd.f32 %v767, %v855
        %857 = vmatmul.bf16.gmra.mxu0 %v315
        %v858 = vpop.f32.mrf.mxu0
        %v859 = vadd.f32 %v770, %v858
        %v860 = vpop.f32.mrf.mxu0
        %v861 = vadd.f32 %v772, %v860
        %862 = vmatmul.bf16.gmra.mxu0 %v312
        %v863 = vpop.f32.mrf.mxu0
        %v864 = vadd.f32 %v775, %v863
        %v865 = vpop.f32.mrf.mxu0
        %v866 = vadd.f32 %v777, %v865
        %867 = vmatmul.bf16.gmra.mxu0 %v323
        %v868 = vpop.f32.mrf.mxu0
        %v869 = vadd.f32 %v780, %v868
        %v870 = vpop.f32.mrf.mxu0
        %v871 = vadd.f32 %v782, %v870
        %872 = vdwg.mxu0
        %v873 = vmul.f32 %v616, %v616
        %v874 = vmul.f32 %v618, %v618
        %v875 = vmul.f32 %v621, %v621
        %v876 = vmul.f32 %v623, %v623
        %v877 = vmul.f32 %v626, %v626
        %v878 = vmul.f32 %v628, %v628
        %v879 = vmul.f32 %v631, %v631
        %v880 = vmul.f32 %v633, %v633
        %v881 = vmul.f32 %v636, %v636
        %v882 = vmul.f32 %v638, %v638
        %v883 = vmul.f32 %v641, %v641
        %v884 = vmul.f32 %v643, %v643
        %v885 = vmul.f32 %v646, %v646
        %v886 = vmul.f32 %v648, %v648
        %v887 = vmul.f32 %v651, %v651
        %v888 = vmul.f32 %v653, %v653
        %v889 = vmul.f32 %v656, %v656
        %v890 = vmul.f32 %v658, %v658
        %v891 = vmul.f32 %v661, %v661
        %v892 = vmul.f32 %v663, %v663
        %v893 = vmul.f32 %v666, %v666
        %v894 = vmul.f32 %v668, %v668
        %v895 = vmul.f32 %v671, %v671
        %v896 = vmul.f32 %v673, %v673
        %v897 = vmul.f32 %v676, %v676
        %v898 = vmul.f32 %v678, %v678
        %v899 = vmul.f32 %v681, %v681
        %v900 = vmul.f32 %v683, %v683
        %v901 = vmul.f32 %v686, %v686
        %v902 = vmul.f32 %v688, %v688
        %v903 = vmul.f32 %v691, %v691
        %v904 = vmul.f32 %v693, %v693
        %v905 = vmul.f32 %v794, %v794
        %v906 = vmul.f32 %v796, %v796
        %v907 = vmul.f32 %v799, %v799
        %v908 = vmul.f32 %v801, %v801
        %v909 = vmul.f32 %v804, %v804
        %v910 = vmul.f32 %v806, %v806
        %v911 = vmul.f32 %v809, %v809
        %v912 = vmul.f32 %v811, %v811
        %v913 = vmul.f32 %v814, %v814
        %v914 = vmul.f32 %v816, %v816
        %v915 = vmul.f32 %v819, %v819
        %v916 = vmul.f32 %v821, %v821
        %v917 = vmul.f32 %v824, %v824
        %v918 = vmul.f32 %v826, %v826
        %v919 = vmul.f32 %v829, %v829
        %v920 = vmul.f32 %v831, %v831
        %v921 = vmul.f32 %v834, %v834
        %v922 = vmul.f32 %v836, %v836
        %v923 = vmul.f32 %v839, %v839
        %v924 = vmul.f32 %v841, %v841
        %v925 = vmul.f32 %v844, %v844
        %v926 = vmul.f32 %v846, %v846
        %v927 = vmul.f32 %v849, %v849
        %v928 = vmul.f32 %v851, %v851
        %v929 = vmul.f32 %v854, %v854
        %v930 = vmul.f32 %v856, %v856
        %v931 = vmul.f32 %v859, %v859
        %v932 = vmul.f32 %v861, %v861
        %v933 = vmul.f32 %v864, %v864
        %v934 = vmul.f32 %v866, %v866
        %v935 = vmul.f32 %v869, %v869
        %v936 = vmul.f32 %v871, %v871
        %v937 = vadd.f32 %v873, %v905
        %v938 = vadd.f32 %v874, %v906
        %v939 = vadd.f32 %v875, %v907
        %v940 = vadd.f32 %v876, %v908
        %v941 = vadd.f32 %v877, %v909
        %v942 = vadd.f32 %v878, %v910
        %v943 = vadd.f32 %v879, %v911
        %v944 = vadd.f32 %v880, %v912
        %v945 = vadd.f32 %v881, %v913
        %v946 = vadd.f32 %v882, %v914
        %v947 = vadd.f32 %v883, %v915
        %v948 = vadd.f32 %v884, %v916
        %v949 = vadd.f32 %v885, %v917
        %v950 = vadd.f32 %v886, %v918
        %v951 = vadd.f32 %v887, %v919
        %v952 = vadd.f32 %v888, %v920
        %v953 = vadd.f32 %v889, %v921
        %v954 = vadd.f32 %v890, %v922
        %v955 = vadd.f32 %v891, %v923
        %v956 = vadd.f32 %v892, %v924
        %v957 = vadd.f32 %v893, %v925
        %v958 = vadd.f32 %v894, %v926
        %v959 = vadd.f32 %v895, %v927
        %v960 = vadd.f32 %v896, %v928
        %v961 = vadd.f32 %v897, %v929
        %v962 = vadd.f32 %v898, %v930
        %v963 = vadd.f32 %v899, %v931
        %v964 = vadd.f32 %v900, %v932
        %v965 = vadd.f32 %v901, %v933
        %v966 = vadd.f32 %v902, %v934
        %v967 = vadd.f32 %v903, %v935
        %v968 = vadd.f32 %v904, %v936
        %v969 = vld [vmem:[#allocation7] sm:$0xff]
        %v970 = vld [vmem:[#allocation7 + $0x8] sm:$0xff]
        %v971 = vld [vmem:[#allocation7 + $0x10] sm:$0xff]
        %v972 = vld [vmem:[#allocation7 + $0x18] sm:$0xff]
        %v973 = vld [vmem:[#allocation7 + $0x20] sm:$0xff]
        %v974 = vld [vmem:[#allocation7 + $0x28] sm:$0xff]
        %v975 = vld [vmem:[#allocation7 + $0x30] sm:$0xff]
        %v976 = vld [vmem:[#allocation7 + $0x38] sm:$0xff]
        %v977 = vld [vmem:[#allocation7 + $0x40] sm:$0xff]
        %v978 = vld [vmem:[#allocation7 + $0x48] sm:$0xff]
        %v979 = vld [vmem:[#allocation7 + $0x50] sm:$0xff]
        %v980 = vld [vmem:[#allocation7 + $0x58] sm:$0xff]
        %v981 = vld [vmem:[#allocation7 + $0x60] sm:$0xff]
        %v982 = vld [vmem:[#allocation7 + $0x68] sm:$0xff]
        %v983 = vld [vmem:[#allocation7 + $0x70] sm:$0xff]
        %v984 = vld [vmem:[#allocation7 + $0x78] sm:$0xff]
        %985 = vmatpush.msra.mxu0 %v984
        %986 = vmatpush.msra.mxu0 %v983
        %987 = vmatpush.msra.mxu0 %v982
        %988 = vmatpush.msra.mxu0 %v981
        %989 = vmatpush.msra.mxu0 %v980
        %990 = vmatpush.msra.mxu0 %v979
        %991 = vmatpush.msra.mxu0 %v978
        %992 = vmatpush.msra.mxu0 %v977
        %993 = vmatpush.msra.mxu0 %v976
        %994 = vmatpush.msra.mxu0 %v975
        %995 = vmatpush.msra.mxu0 %v974
        %996 = vmatpush.msra.mxu0 %v973
        %997 = vmatpush.msra.mxu0 %v972
        %998 = vmatpush.msra.mxu0 %v971
        %999 = vmatpush.msra.mxu0 %v970
        %1000 = vmatpush.msra.mxu0 %v969
        %1001 = vmatmul.f32.gmra.mxu0 %v937
        %v1002 = vpop.f32.mrf.mxu0
        %v1003 = vadd.f32 0.0, %v1002
        %1004 = vmatmul.f32.gmra.mxu0 %v938
        %v1005 = vpop.f32.mrf.mxu0
        %v1006 = vadd.f32 0.0, %v1005
        %1007 = vmatmul.f32.gmra.mxu0 %v939
        %v1008 = vpop.f32.mrf.mxu0
        %v1009 = vadd.f32 0.0, %v1008
        %1010 = vmatmul.f32.gmra.mxu0 %v940
        %v1011 = vpop.f32.mrf.mxu0
        %v1012 = vadd.f32 0.0, %v1011
        %1013 = vmatmul.f32.gmra.mxu0 %v941
        %v1014 = vpop.f32.mrf.mxu0
        %v1015 = vadd.f32 0.0, %v1014
        %1016 = vmatmul.f32.gmra.mxu0 %v942
        %v1017 = vpop.f32.mrf.mxu0
        %v1018 = vadd.f32 0.0, %v1017
        %1019 = vmatmul.f32.gmra.mxu0 %v943
        %v1020 = vpop.f32.mrf.mxu0
        %v1021 = vadd.f32 0.0, %v1020
        %1022 = vmatmul.f32.gmra.mxu0 %v944
        %v1023 = vpop.f32.mrf.mxu0
        %v1024 = vadd.f32 0.0, %v1023
        %1025 = vmatmul.f32.gmra.mxu0 %v945
        %v1026 = vpop.f32.mrf.mxu0
        %v1027 = vadd.f32 0.0, %v1026
        %1028 = vmatmul.f32.gmra.mxu0 %v946
        %v1029 = vpop.f32.mrf.mxu0
        %v1030 = vadd.f32 0.0, %v1029
        %1031 = vmatmul.f32.gmra.mxu0 %v947
        %v1032 = vpop.f32.mrf.mxu0
        %v1033 = vadd.f32 0.0, %v1032
        %1034 = vmatmul.f32.gmra.mxu0 %v948
        %v1035 = vpop.f32.mrf.mxu0
        %v1036 = vadd.f32 0.0, %v1035
        %1037 = vmatmul.f32.gmra.mxu0 %v949
        %v1038 = vpop.f32.mrf.mxu0
        %v1039 = vadd.f32 0.0, %v1038
        %1040 = vmatmul.f32.gmra.mxu0 %v950
        %v1041 = vpop.f32.mrf.mxu0
        %v1042 = vadd.f32 0.0, %v1041
        %1043 = vmatmul.f32.gmra.mxu0 %v951
        %v1044 = vpop.f32.mrf.mxu0
        %v1045 = vadd.f32 0.0, %v1044
        %1046 = vmatmul.f32.gmra.mxu0 %v952
        %v1047 = vpop.f32.mrf.mxu0
        %v1048 = vadd.f32 0.0, %v1047
        %1049 = vmatmul.f32.gmra.mxu0 %v953
        %v1050 = vpop.f32.mrf.mxu0
        %v1051 = vadd.f32 0.0, %v1050
        %1052 = vmatmul.f32.gmra.mxu0 %v954
        %v1053 = vpop.f32.mrf.mxu0
        %v1054 = vadd.f32 0.0, %v1053
        %1055 = vmatmul.f32.gmra.mxu0 %v955
        %v1056 = vpop.f32.mrf.mxu0
        %v1057 = vadd.f32 0.0, %v1056
        %1058 = vmatmul.f32.gmra.mxu0 %v956
        %v1059 = vpop.f32.mrf.mxu0
        %v1060 = vadd.f32 0.0, %v1059
        %1061 = vmatmul.f32.gmra.mxu0 %v957
        %v1062 = vpop.f32.mrf.mxu0
        %v1063 = vadd.f32 0.0, %v1062
        %1064 = vmatmul.f32.gmra.mxu0 %v958
        %v1065 = vpop.f32.mrf.mxu0
        %v1066 = vadd.f32 0.0, %v1065
        %1067 = vmatmul.f32.gmra.mxu0 %v959
        %v1068 = vpop.f32.mrf.mxu0
        %v1069 = vadd.f32 0.0, %v1068
        %1070 = vmatmul.f32.gmra.mxu0 %v960
        %v1071 = vpop.f32.mrf.mxu0
        %v1072 = vadd.f32 0.0, %v1071
        %1073 = vmatmul.f32.gmra.mxu0 %v961
        %v1074 = vpop.f32.mrf.mxu0
        %v1075 = vadd.f32 0.0, %v1074
        %1076 = vmatmul.f32.gmra.mxu0 %v962
        %v1077 = vpop.f32.mrf.mxu0
        %v1078 = vadd.f32 0.0, %v1077
        %1079 = vmatmul.f32.gmra.mxu0 %v963
        %v1080 = vpop.f32.mrf.mxu0
        %v1081 = vadd.f32 0.0, %v1080
        %1082 = vmatmul.f32.gmra.mxu0 %v964
        %v1083 = vpop.f32.mrf.mxu0
        %v1084 = vadd.f32 0.0, %v1083
        %1085 = vmatmul.f32.gmra.mxu0 %v965
        %v1086 = vpop.f32.mrf.mxu0
        %v1087 = vadd.f32 0.0, %v1086
        %1088 = vmatmul.f32.gmra.mxu0 %v966
        %v1089 = vpop.f32.mrf.mxu0
        %v1090 = vadd.f32 0.0, %v1089
        %1091 = vmatmul.f32.gmra.mxu0 %v967
        %v1092 = vpop.f32.mrf.mxu0
        %v1093 = vadd.f32 0.0, %v1092
        %1094 = vmatmul.f32.gmra.mxu0 %v968
        %v1095 = vpop.f32.mrf.mxu0
        %v1096 = vadd.f32 0.0, %v1095
        %1097 = vdwg.mxu0
        %v1098 = vmax.f32 %v1003, 1e-10
        %v1099 = vmax.f32 %v1006, 1e-10
        %v1100 = vmax.f32 %v1009, 1e-10
        %v1101 = vmax.f32 %v1012, 1e-10
        %v1102 = vmax.f32 %v1015, 1e-10
        %v1103 = vmax.f32 %v1018, 1e-10
        %v1104 = vmax.f32 %v1021, 1e-10
        %v1105 = vmax.f32 %v1024, 1e-10
        %v1106 = vmax.f32 %v1027, 1e-10
        %v1107 = vmax.f32 %v1030, 1e-10
        %v1108 = vmax.f32 %v1033, 1e-10
        %v1109 = vmax.f32 %v1036, 1e-10
        %v1110 = vmax.f32 %v1039, 1e-10
        %v1111 = vmax.f32 %v1042, 1e-10
        %v1112 = vmax.f32 %v1045, 1e-10
        %v1113 = vmax.f32 %v1048, 1e-10
        %v1114 = vmax.f32 %v1051, 1e-10
        %v1115 = vmax.f32 %v1054, 1e-10
        %v1116 = vmax.f32 %v1057, 1e-10
        %v1117 = vmax.f32 %v1060, 1e-10
        %v1118 = vmax.f32 %v1063, 1e-10
        %v1119 = vmax.f32 %v1066, 1e-10
        %v1120 = vmax.f32 %v1069, 1e-10
        %v1121 = vmax.f32 %v1072, 1e-10
        %v1122 = vmax.f32 %v1075, 1e-10
        %v1123 = vmax.f32 %v1078, 1e-10
        %v1124 = vmax.f32 %v1081, 1e-10
        %v1125 = vmax.f32 %v1084, 1e-10
        %v1126 = vmax.f32 %v1087, 1e-10
        %v1127 = vmax.f32 %v1090, 1e-10
        %v1128 = vmax.f32 %v1093, 1e-10
        %v1129 = vmax.f32 %v1096, 1e-10
        %v1130 = vlog2.pop %v1098
        %v1131 = vmul.f32 %v1130, 0.6931472
        %v1132 = vlog2.pop %v1099
        %v1133 = vmul.f32 %v1132, 0.6931472
        %v1134 = vlog2.pop %v1100
        %v1135 = vmul.f32 %v1134, 0.6931472
        %v1136 = vlog2.pop %v1101
        %v1137 = vmul.f32 %v1136, 0.6931472
        %v1138 = vlog2.pop %v1102
        %v1139 = vmul.f32 %v1138, 0.6931472
        %v1140 = vlog2.pop %v1103
        %v1141 = vmul.f32 %v1140, 0.6931472
        %v1142 = vlog2.pop %v1104
        %v1143 = vmul.f32 %v1142, 0.6931472
        %v1144 = vlog2.pop %v1105
        %v1145 = vmul.f32 %v1144, 0.6931472
        %v1146 = vlog2.pop %v1106
        %v1147 = vmul.f32 %v1146, 0.6931472
        %v1148 = vlog2.pop %v1107
        %v1149 = vmul.f32 %v1148, 0.6931472
        %v1150 = vlog2.pop %v1108
        %v1151 = vmul.f32 %v1150, 0.6931472
        %v1152 = vlog2.pop %v1109
        %v1153 = vmul.f32 %v1152, 0.6931472
        %v1154 = vlog2.pop %v1110
        %v1155 = vmul.f32 %v1154, 0.6931472
        %v1156 = vlog2.pop %v1111
        %v1157 = vmul.f32 %v1156, 0.6931472
        %v1158 = vlog2.pop %v1112
        %v1159 = vmul.f32 %v1158, 0.6931472
        %v1160 = vlog2.pop %v1113
        %v1161 = vmul.f32 %v1160, 0.6931472
        %v1162 = vlog2.pop %v1114
        %v1163 = vmul.f32 %v1162, 0.6931472
        %v1164 = vlog2.pop %v1115
        %v1165 = vmul.f32 %v1164, 0.6931472
        %v1166 = vlog2.pop %v1116
        %v1167 = vmul.f32 %v1166, 0.6931472
        %v1168 = vlog2.pop %v1117
        %v1169 = vmul.f32 %v1168, 0.6931472
        %v1170 = vlog2.pop %v1118
        %v1171 = vmul.f32 %v1170, 0.6931472
        %v1172 = vlog2.pop %v1119
        %v1173 = vmul.f32 %v1172, 0.6931472
        %v1174 = vlog2.pop %v1120
        %v1175 = vmul.f32 %v1174, 0.6931472
        %v1176 = vlog2.pop %v1121
        %v1177 = vmul.f32 %v1176, 0.6931472
        %v1178 = vlog2.pop %v1122
        %v1179 = vmul.f32 %v1178, 0.6931472
        %v1180 = vlog2.pop %v1123
        %v1181 = vmul.f32 %v1180, 0.6931472
        %v1182 = vlog2.pop %v1124
        %v1183 = vmul.f32 %v1182, 0.6931472
        %v1184 = vlog2.pop %v1125
        %v1185 = vmul.f32 %v1184, 0.6931472
        %v1186 = vlog2.pop %v1126
        %v1187 = vmul.f32 %v1186, 0.6931472
        %v1188 = vlog2.pop %v1127
        %v1189 = vmul.f32 %v1188, 0.6931472
        %v1190 = vlog2.pop %v1128
        %v1191 = vmul.f32 %v1190, 0.6931472
        %v1192 = vlog2.pop %v1129
        %v1193 = vmul.f32 %v1192, 0.6931472
        %v1194 = vmul.f32 %v1131, 0.4342945
        %v1195 = vmul.f32 %v1133, 0.4342945
        %v1196 = vmul.f32 %v1135, 0.4342945
        %v1197 = vmul.f32 %v1137, 0.4342945
        %v1198 = vmul.f32 %v1139, 0.4342945
        %v1199 = vmul.f32 %v1141, 0.4342945
        %v1200 = vmul.f32 %v1143, 0.4342945
        %v1201 = vmul.f32 %v1145, 0.4342945
        %v1202 = vmul.f32 %v1147, 0.4342945
        %v1203 = vmul.f32 %v1149, 0.4342945
        %v1204 = vmul.f32 %v1151, 0.4342945
        %v1205 = vmul.f32 %v1153, 0.4342945
        %v1206 = vmul.f32 %v1155, 0.4342945
        %v1207 = vmul.f32 %v1157, 0.4342945
        %v1208 = vmul.f32 %v1159, 0.4342945
        %v1209 = vmul.f32 %v1161, 0.4342945
        %v1210 = vmul.f32 %v1163, 0.4342945
        %v1211 = vmul.f32 %v1165, 0.4342945
        %v1212 = vmul.f32 %v1167, 0.4342945
        %v1213 = vmul.f32 %v1169, 0.4342945
        %v1214 = vmul.f32 %v1171, 0.4342945
        %v1215 = vmul.f32 %v1173, 0.4342945
        %v1216 = vmul.f32 %v1175, 0.4342945
        %v1217 = vmul.f32 %v1177, 0.4342945
        %v1218 = vmul.f32 %v1179, 0.4342945
        %v1219 = vmul.f32 %v1181, 0.4342945
        %v1220 = vmul.f32 %v1183, 0.4342945
        %v1221 = vmul.f32 %v1185, 0.4342945
        %v1222 = vmul.f32 %v1187, 0.4342945
        %v1223 = vmul.f32 %v1189, 0.4342945
        %v1224 = vmul.f32 %v1191, 0.4342945
        %v1225 = vmul.f32 %v1193, 0.4342945
        %1226 = vmax.xlane.f32.xlu0 %v1194
        %v1227 = vpop.xlane.xlu0 %1226
        %1228 = vmax.xlane.f32.xlu0 %v1195
        %v1229 = vpop.xlane.xlu0 %1228
        %1230 = vmax.xlane.f32.xlu0 %v1196
        %v1231 = vpop.xlane.xlu0 %1230
        %1232 = vmax.xlane.f32.xlu0 %v1197
        %v1233 = vpop.xlane.xlu0 %1232
        %1234 = vmax.xlane.f32.xlu0 %v1198
        %v1235 = vpop.xlane.xlu0 %1234
        %1236 = vmax.xlane.f32.xlu0 %v1199
        %v1237 = vpop.xlane.xlu0 %1236
        %1238 = vmax.xlane.f32.xlu0 %v1200
        %v1239 = vpop.xlane.xlu0 %1238
        %1240 = vmax.xlane.f32.xlu0 %v1201
        %v1241 = vpop.xlane.xlu0 %1240
        %1242 = vmax.xlane.f32.xlu0 %v1202
        %v1243 = vpop.xlane.xlu0 %1242
        %1244 = vmax.xlane.f32.xlu0 %v1203
        %v1245 = vpop.xlane.xlu0 %1244
        %1246 = vmax.xlane.f32.xlu0 %v1204
        %v1247 = vpop.xlane.xlu0 %1246
        %1248 = vmax.xlane.f32.xlu0 %v1205
        %v1249 = vpop.xlane.xlu0 %1248
        %1250 = vmax.xlane.f32.xlu0 %v1206
        %v1251 = vpop.xlane.xlu0 %1250
        %1252 = vmax.xlane.f32.xlu0 %v1207
        %v1253 = vpop.xlane.xlu0 %1252
        %1254 = vmax.xlane.f32.xlu0 %v1208
        %v1255 = vpop.xlane.xlu0 %1254
        %1256 = vmax.xlane.f32.xlu0 %v1209
        %v1257 = vpop.xlane.xlu0 %1256
        %1258 = vmax.xlane.f32.xlu0 %v1210
        %v1259 = vpop.xlane.xlu0 %1258
        %1260 = vmax.xlane.f32.xlu0 %v1211
        %v1261 = vpop.xlane.xlu0 %1260
        %1262 = vmax.xlane.f32.xlu0 %v1212
        %v1263 = vpop.xlane.xlu0 %1262
        %1264 = vmax.xlane.f32.xlu0 %v1213
        %v1265 = vpop.xlane.xlu0 %1264
        %1266 = vmax.xlane.f32.xlu0 %v1214
        %v1267 = vpop.xlane.xlu0 %1266
        %1268 = vmax.xlane.f32.xlu0 %v1215
        %v1269 = vpop.xlane.xlu0 %1268
        %1270 = vmax.xlane.f32.xlu0 %v1216
        %v1271 = vpop.xlane.xlu0 %1270
        %1272 = vmax.xlane.f32.xlu0 %v1217
        %v1273 = vpop.xlane.xlu0 %1272
        %1274 = vmax.xlane.f32.xlu0 %v1218
        %v1275 = vpop.xlane.xlu0 %1274
        %1276 = vmax.xlane.f32.xlu0 %v1219
        %v1277 = vpop.xlane.xlu0 %1276
        %1278 = vmax.xlane.f32.xlu0 %v1220
        %v1279 = vpop.xlane.xlu0 %1278
        %1280 = vmax.xlane.f32.xlu0 %v1221
        %v1281 = vpop.xlane.xlu0 %1280
        %1282 = vmax.xlane.f32.xlu0 %v1222
        %v1283 = vpop.xlane.xlu0 %1282
        %1284 = vmax.xlane.f32.xlu0 %v1223
        %v1285 = vpop.xlane.xlu0 %1284
        %1286 = vmax.xlane.f32.xlu0 %v1224
        %v1287 = vpop.xlane.xlu0 %1286
        %1288 = vmax.xlane.f32.xlu0 %v1225
        %v1289 = vpop.xlane.xlu0 %1288
        %v1290 = vmax.f32 %v1227, %v1235
        %v1291 = vmax.f32 %v1231, %v1239
        %v1292 = vmax.f32 %v1290, %v1243
        %v1293 = vmax.f32 %v1291, %v1247
        %v1294 = vmax.f32 %v1292, %v1251
        %v1295 = vmax.f32 %v1293, %v1255
        %v1296 = vmax.f32 %v1294, %v1259
        %v1297 = vmax.f32 %v1295, %v1263
        %v1298 = vmax.f32 %v1296, %v1267
        %v1299 = vmax.f32 %v1297, %v1271
        %v1300 = vmax.f32 %v1298, %v1275
        %v1301 = vmax.f32 %v1299, %v1279
        %v1302 = vmax.f32 %v1300, %v1283
        %v1303 = vmax.f32 %v1301, %v1287
        %v1304 = vmax.f32 %v1302, %v1303
        %v1305 = vmax.f32 %v1229, %v1237
        %v1306 = vmax.f32 %v1233, %v1241
        %v1307 = vmax.f32 %v1305, %v1245
        %v1308 = vmax.f32 %v1306, %v1249
        %v1309 = vmax.f32 %v1307, %v1253
        %v1310 = vmax.f32 %v1308, %v1257
        %v1311 = vmax.f32 %v1309, %v1261
        %v1312 = vmax.f32 %v1310, %v1265
        %v1313 = vmax.f32 %v1311, %v1269
        %v1314 = vmax.f32 %v1312, %v1273
        %v1315 = vmax.f32 %v1313, %v1277
        %v1316 = vmax.f32 %v1314, %v1281
        %v1317 = vmax.f32 %v1315, %v1285
        %v1318 = vmax.f32 %v1316, %v1289
        %v1319 = vmax.f32 %v1317, %v1318
        %v1320 = vsub.f32 %v1304, 8.0
        %v1321 = vsub.f32 %v1319, 8.0
        %v1322 = vmax.f32 %v1194, %v1320
        %v1323 = vmax.f32 %v1195, %v1321
        %v1324 = vmax.f32 %v1196, %v1320
        %v1325 = vmax.f32 %v1197, %v1321
        %v1326 = vmax.f32 %v1198, %v1320
        %v1327 = vmax.f32 %v1199, %v1321
        %v1328 = vmax.f32 %v1200, %v1320
        %v1329 = vmax.f32 %v1201, %v1321
        %v1330 = vmax.f32 %v1202, %v1320
        %v1331 = vmax.f32 %v1203, %v1321
        %v1332 = vmax.f32 %v1204, %v1320
        %v1333 = vmax.f32 %v1205, %v1321
        %v1334 = vmax.f32 %v1206, %v1320
        %v1335 = vmax.f32 %v1207, %v1321
        %v1336 = vmax.f32 %v1208, %v1320
        %v1337 = vmax.f32 %v1209, %v1321
        %v1338 = vmax.f32 %v1210, %v1320
        %v1339 = vmax.f32 %v1211, %v1321
        %v1340 = vmax.f32 %v1212, %v1320
        %v1341 = vmax.f32 %v1213, %v1321
        %v1342 = vmax.f32 %v1214, %v1320
        %v1343 = vmax.f32 %v1215, %v1321
        %v1344 = vmax.f32 %v1216, %v1320
        %v1345 = vmax.f32 %v1217, %v1321
        %v1346 = vmax.f32 %v1218, %v1320
        %v1347 = vmax.f32 %v1219, %v1321
        %v1348 = vmax.f32 %v1220, %v1320
        %v1349 = vmax.f32 %v1221, %v1321
        %v1350 = vmax.f32 %v1222, %v1320
        %v1351 = vmax.f32 %v1223, %v1321
        %v1352 = vmax.f32 %v1224, %v1320
        %v1353 = vmax.f32 %v1225, %v1321
        %v1354 = vadd.f32 %v1322, 4.0
        %v1355 = vadd.f32 %v1323, 4.0
        %v1356 = vadd.f32 %v1324, 4.0
        %v1357 = vadd.f32 %v1325, 4.0
        %v1358 = vadd.f32 %v1326, 4.0
        %v1359 = vadd.f32 %v1327, 4.0
        %v1360 = vadd.f32 %v1328, 4.0
        %v1361 = vadd.f32 %v1329, 4.0
        %v1362 = vadd.f32 %v1330, 4.0
        %v1363 = vadd.f32 %v1331, 4.0
        %v1364 = vadd.f32 %v1332, 4.0
        %v1365 = vadd.f32 %v1333, 4.0
        %v1366 = vadd.f32 %v1334, 4.0
        %v1367 = vadd.f32 %v1335, 4.0
        %v1368 = vadd.f32 %v1336, 4.0
        %v1369 = vadd.f32 %v1337, 4.0
        %v1370 = vadd.f32 %v1338, 4.0
        %v1371 = vadd.f32 %v1339, 4.0
        %v1372 = vadd.f32 %v1340, 4.0
        %v1373 = vadd.f32 %v1341, 4.0
        %v1374 = vadd.f32 %v1342, 4.0
        %v1375 = vadd.f32 %v1343, 4.0
        %v1376 = vadd.f32 %v1344, 4.0
        %v1377 = vadd.f32 %v1345, 4.0
        %v1378 = vadd.f32 %v1346, 4.0
        %v1379 = vadd.f32 %v1347, 4.0
        %v1380 = vadd.f32 %v1348, 4.0
        %v1381 = vadd.f32 %v1349, 4.0
        %v1382 = vadd.f32 %v1350, 4.0
        %v1383 = vadd.f32 %v1351, 4.0
        %v1384 = vadd.f32 %v1352, 4.0
        %v1385 = vadd.f32 %v1353, 4.0
        %v1386 = vmul.f32 %v1354, 0.25
        %v1387 = vmul.f32 %v1355, 0.25
        %v1388 = vmul.f32 %v1356, 0.25
        %v1389 = vmul.f32 %v1357, 0.25
        %v1390 = vmul.f32 %v1358, 0.25
        %v1391 = vmul.f32 %v1359, 0.25
        %v1392 = vmul.f32 %v1360, 0.25
        %v1393 = vmul.f32 %v1361, 0.25
        %v1394 = vmul.f32 %v1362, 0.25
        %v1395 = vmul.f32 %v1363, 0.25
        %v1396 = vmul.f32 %v1364, 0.25
        %v1397 = vmul.f32 %v1365, 0.25
        %v1398 = vmul.f32 %v1366, 0.25
        %v1399 = vmul.f32 %v1367, 0.25
        %v1400 = vmul.f32 %v1368, 0.25
        %v1401 = vmul.f32 %v1369, 0.25
        %v1402 = vmul.f32 %v1370, 0.25
        %v1403 = vmul.f32 %v1371, 0.25
        %v1404 = vmul.f32 %v1372, 0.25
        %v1405 = vmul.f32 %v1373, 0.25
        %v1406 = vmul.f32 %v1374, 0.25
        %v1407 = vmul.f32 %v1375, 0.25
        %v1408 = vmul.f32 %v1376, 0.25
        %v1409 = vmul.f32 %v1377, 0.25
        %v1410 = vmul.f32 %v1378, 0.25
        %v1411 = vmul.f32 %v1379, 0.25
        %v1412 = vmul.f32 %v1380, 0.25
        %v1413 = vmul.f32 %v1381, 0.25
        %v1414 = vmul.f32 %v1382, 0.25
        %v1415 = vmul.f32 %v1383, 0.25
        %v1416 = vmul.f32 %v1384, 0.25
        %v1417 = vmul.f32 %v1385, 0.25
        %v1418 = vpack.c.bf16 %v1386, %v1386
        %v1419 = vpack.c.bf16 %v1387, %v1387
        %v1420 = vpack.c.bf16 %v1388, %v1388
        %v1421 = vpack.c.bf16 %v1389, %v1389
        %v1422 = vpack.c.bf16 %v1390, %v1390
        %v1423 = vpack.c.bf16 %v1391, %v1391
        %v1424 = vpack.c.bf16 %v1392, %v1392
        %v1425 = vpack.c.bf16 %v1393, %v1393
        %v1426 = vpack.c.bf16 %v1394, %v1394
        %v1427 = vpack.c.bf16 %v1395, %v1395
        %v1428 = vpack.c.bf16 %v1396, %v1396
        %v1429 = vpack.c.bf16 %v1397, %v1397
        %v1430 = vpack.c.bf16 %v1398, %v1398
        %v1431 = vpack.c.bf16 %v1399, %v1399
        %v1432 = vpack.c.bf16 %v1400, %v1400
        %v1433 = vpack.c.bf16 %v1401, %v1401
        %v1434 = vpack.c.bf16 %v1402, %v1402
        %v1435 = vpack.c.bf16 %v1403, %v1403
        %v1436 = vpack.c.bf16 %v1404, %v1404
        %v1437 = vpack.c.bf16 %v1405, %v1405
        %v1438 = vpack.c.bf16 %v1406, %v1406
        %v1439 = vpack.c.bf16 %v1407, %v1407
        %v1440 = vpack.c.bf16 %v1408, %v1408
        %v1441 = vpack.c.bf16 %v1409, %v1409
        %v1442 = vpack.c.bf16 %v1410, %v1410
        %v1443 = vpack.c.bf16 %v1411, %v1411
        %v1444 = vpack.c.bf16 %v1412, %v1412
        %v1445 = vpack.c.bf16 %v1413, %v1413
        %v1446 = vpack.c.bf16 %v1414, %v1414
        %v1447 = vpack.c.bf16 %v1415, %v1415
        %v1448 = vpack.c.bf16 %v1416, %v1416
        %v1449 = vpack.c.bf16 %v1417, %v1417
        %1450 = vst [vmem:[%s224] sm:$0xf] %v1418
        %1451 = vst [vmem:[%s224 + $0x4] sm:$0xf] %v1419
        %1452 = vst [vmem:[%s224 + $0x8] sm:$0xf] %v1420
        %1453 = vst [vmem:[%s224 + $0xc] sm:$0xf] %v1421
        %1454 = vst [vmem:[%s224 + $0x10] sm:$0xf] %v1422
        %1455 = vst [vmem:[%s224 + $0x14] sm:$0xf] %v1423
        %1456 = vst [vmem:[%s224 + $0x18] sm:$0xf] %v1424
        %1457 = vst [vmem:[%s224 + $0x1c] sm:$0xf] %v1425
        %1458 = vst [vmem:[%s224 + $0x20] sm:$0xf] %v1426
        %1459 = vst [vmem:[%s224 + $0x24] sm:$0xf] %v1427
        %1460 = vst [vmem:[%s224 + $0x28] sm:$0xf] %v1428
        %1461 = vst [vmem:[%s224 + $0x2c] sm:$0xf] %v1429
        %1462 = vst [vmem:[%s224 + $0x30] sm:$0xf] %v1430
        %1463 = vst [vmem:[%s224 + $0x34] sm:$0xf] %v1431
        %1464 = vst [vmem:[%s224 + $0x38] sm:$0xf] %v1432
        %1465 = vst [vmem:[%s224 + $0x3c] sm:$0xf] %v1433
        %1466 = vst [vmem:[%s224 + $0x40] sm:$0xf] %v1434
        %1467 = vst [vmem:[%s224 + $0x44] sm:$0xf] %v1435
        %1468 = vst [vmem:[%s224 + $0x48] sm:$0xf] %v1436
        %1469 = vst [vmem:[%s224 + $0x4c] sm:$0xf] %v1437
        %1470 = vst [vmem:[%s224 + $0x50] sm:$0xf] %v1438
        %1471 = vst [vmem:[%s224 + $0x54] sm:$0xf] %v1439
        %1472 = vst [vmem:[%s224 + $0x58] sm:$0xf] %v1440
        %1473 = vst [vmem:[%s224 + $0x5c] sm:$0xf] %v1441
        %1474 = vst [vmem:[%s224 + $0x60] sm:$0xf] %v1442
        %1475 = vst [vmem:[%s224 + $0x64] sm:$0xf] %v1443
        %1476 = vst [vmem:[%s224 + $0x68] sm:$0xf] %v1444
        %1477 = vst [vmem:[%s224 + $0x6c] sm:$0xf] %v1445
        %1478 = vst [vmem:[%s224 + $0x70] sm:$0xf] %v1446
        %1479 = vst [vmem:[%s224 + $0x74] sm:$0xf] %v1447
        %1480 = vst [vmem:[%s224 + $0x78] sm:$0xf] %v1448
        %1481 = vst [vmem:[%s224 + $0x7c] sm:$0xf] %v1449
        %s1482 = sand.u32 %s97, 1
        %s1483 = scalar_lea.sflag [#allocation4], %s1482
        %s1484 = sand.u32 %s97, 1
        %s1485 = smul.addr %s1484, 128
        %s1486 = scalar_lea.vmem [#allocation8], %s1485
        // Predicated region
        $region45: #{tpu_custom_call.1} parent=31 // pred_check
          %p1487 = pneg %p107
        $region46: #{tpu_custom_call.1} parent=31 // pred_check_branch
          %1489 = sbr.rel (%p1487) target = $region48
        $region47: #{tpu_custom_call.1} parent=31 // pred_region
          %s1490 = smul.u32 32, %s21
          %1492 = vsyncadd %s1483, 0
          %s1493 = smul.addr %s1490, 4
          %s1494 = scalar_lea.hbm %s3, %s1493
          %s1495 = sshll.u32 %s1486, 4
          %s1496 = int_to_ptr.vmem [resolvable:$true] %s1495
          %s1497 = sshll.u32 %s1494, 4
          %s1498 = int_to_ptr.hbm [resolvable:$true] %s1497
          %1503 = dma.vmem_to_hbm [thread:$0]  %s1496, 2048, %s1498, %s1483, 64, 64, 4
        $region48: #{tpu_custom_call.1} parent=31 // pred_fallthru
          _
      $region32: #{tpu_custom_call.1} parent=5 // pred_fallthru
        _
      %p1504 = scmp.le.s32.totalorder 2, %s16
      // Predicated region
      $region49: #{tpu_custom_call.1} parent=5 // pred_check
        %p1505 = pneg %p1504
      $region50: #{tpu_custom_call.1} parent=5 // pred_check_branch
        %1507 = sbr.rel (%p1505) target = $region52
      $region51: #{tpu_custom_call.1} parent=5 // pred_region
        %s1508 = ssub.s32 %s16, 2
        // Predicated region
        $region53: #{tpu_custom_call.1} parent=51 // pred_check
          %p1509 = pneg %p113
        $region54: #{tpu_custom_call.1} parent=51 // pred_check_branch
          %1511 = sbr.rel (%p1509) target = $region56
        $region55: #{tpu_custom_call.1} parent=51 // pred_region
          %s1512 = sand.u32 %s98, 1
          %s1513 = scalar_lea.sflag [#allocation4], %s1512
          %s1514 = sand.u32 %s98, 1
          %s1515 = smul.addr %s1514, 128
          %s1516 = scalar_lea.vmem [#allocation8], %s1515
          %1518 = dma.done %s1513, 2048
        $region56: #{tpu_custom_call.1} parent=51 // pred_fallthru
          _
      $region52: #{tpu_custom_call.1} parent=5 // pred_fallthru
        _
    $region6: #{tpu_custom_call.1} parent=1 // loop_footer
      %s20 = sadd.s32 1, %s16
    $region7: #{tpu_custom_call.1} parent=1 // loop_footer_branch
      %15 = sbr.rel target = $region3
    $region8: #{tpu_custom_call.1} parent=1 // loop_exit
      _
    %1519 = vsyncpa [#allocation3], 1
    %s1520 = scalar_lea.sflag [#allocation3], 1
    %1521 = vsyncpa %s1520, 1
    %1522 = vsyncpa [#allocation6], 1
    %1523 = vsyncpa [#allocation4], 1
    %s1524 = scalar_lea.sflag [#allocation4], 1
    %1525 = vsyncpa %s1524, 1

</llo_original>
